<compile_context>
chip_gen: v5e
topology: v5e:2x2
jax: 0.10.0
libtpu: 0.0.40
codegen_flags: <defaults>
</compile_context>

<pallas_src>
import functools
import math

import jax
import jax.numpy as jnp
from jax.experimental import pallas as pl
from jax.experimental.pallas import tpu as pltpu

NUM_GROUPS = 32
EPS = 1e-6
LANE = 128
_MIB = 1024 * 1024


# ----------------------------- kernels ---------------------------------------


def _qkv_kernel(x_ref, scale_ref, shift_ref, wqkv_ref, bqkv_ref, q_ref, k_ref, v_ref):
    # x_ref: (1, TP, Cp) f32   scale/shift: (1, 1, Cp) f32
    # wqkv:  (Cp, 3*Cp) bf16   bqkv: (1, 3*Cp) f32
    x = x_ref[0]                                                    # (TP, Cp) f32
    h = (x * scale_ref[0] + shift_ref[0]).astype(jnp.bfloat16)      # GroupNorm apply
    qkv = (jnp.dot(h, wqkv_ref[...], preferred_element_type=jnp.float32)
           + bqkv_ref[...]).astype(jnp.bfloat16)                    # (TP, 3*Cp) bf16
    c = q_ref.shape[-1]
    q_ref[0] = qkv[:, :c]                 # attention 1/sqrt(C) already folded into wq/bq
    k_ref[0] = qkv[:, c:2 * c]
    v_ref[0] = qkv[:, 2 * c:]


def _flash_attn_kernel(q_ref, k_ref, v_ref, xres_ref, wp_ref, bp_ref, o_ref,
                       m_sc, l_sc, acc_sc, *, tk, hw, mask_keys, bf16_exp):
    # q_ref:  (1, TQ, Cp) bf16     k_ref / v_ref: (1, HWp, Cp) bf16  -- FULL-HW resident
    # xres:   (1, TQ, Cp) f32      wp: (Cp, Cp) bf16   bp: (1, Cp) f32
    ki = pl.program_id(2)

    @pl.when(ki == 0)
    def _():
        m_sc[...] = jnp.full_like(m_sc, -jnp.inf)
        l_sc[...] = jnp.zeros_like(l_sc)
        acc_sc[...] = jnp.zeros_like(acc_sc)

    kv_start = pl.multiple_of(ki * tk, LANE)
    k_blk = k_ref[0, pl.ds(kv_start, tk), :]          # (TK, Cp) bf16 (slice of resident K)
    v_blk = v_ref[0, pl.ds(kv_start, tk), :]          # (TK, Cp) bf16 (slice of resident V)

    q = q_ref[0]                                      # (TQ, Cp) bf16
    # scores: contract over channels, f32 accumulation on the MXU
    s = jax.lax.dot_general(q, k_blk, (((1,), (1,)), ((), ())),
                            preferred_element_type=jnp.float32)     # (TQ, TK) f32

    if mask_keys:
        col = kv_start + jax.lax.broadcasted_iota(jnp.int32, (1, tk), 1)
        s = jnp.where(col < hw, s, -1e30)             # mask padded key positions

    m_prev = m_sc[...]
    m_new = jnp.maximum(m_prev, jnp.max(s, axis=-1, keepdims=True))
    alpha = jnp.exp(m_prev - m_new)                   # per-row rescale (TQ, 1), f32
    if bf16_exp:
        # bf16 exp halves EUP pushes and skips the separate f32->bf16 cast (v6e/v7x).
        p = jnp.exp((s - m_new).astype(jnp.bfloat16))
        row_sum = jnp.sum(p, axis=-1, keepdims=True, dtype=jnp.float32)
    else:
        p_f32 = jnp.exp(s - m_new)
        row_sum = jnp.sum(p_f32, axis=-1, keepdims=True)
        p = p_f32.astype(jnp.bfloat16)
    l_sc[...] = alpha * l_sc[...] + row_sum
    acc_sc[...] = alpha * acc_sc[...] + jnp.dot(p, v_blk, preferred_element_type=jnp.float32)
    m_sc[...] = m_new

    @pl.when(ki == pl.num_programs(2) - 1)
    def _():
        inv_l = pl.reciprocal(l_sc[...], approx=True)               # deferred softmax normalize
        attn = (acc_sc[...] * inv_l).astype(jnp.bfloat16)
        proj = jnp.dot(attn, wp_ref[...], preferred_element_type=jnp.float32) + bp_ref[...]
        o_ref[0] = xres_ref[0] + proj                               # residual on original x


# ----------------------------- wrapper ----------------------------------------


def _round_up(x, m):
    return (x + m - 1) // m * m


def _vmem_physical_bytes():
    try:
        return int(pltpu.get_tpu_info().vmem_capacity_bytes)
    except Exception:
        pass
    try:
        kind = jax.devices()[0].device_kind.lower()
        if "v7" in kind or "7x" in kind:
            return 64 * _MIB
    except Exception:
        pass
    return 128 * _MIB


def _clamp_vmem(est_bytes):
    # Per-generation ceiling: ~100 MiB on 128-MiB chips (v5e/v6e), 48 MiB on 64-MiB v7x.
    phys = _vmem_physical_bytes()
    ceiling = 100 * _MIB if phys >= 128 * _MIB else 48 * _MIB
    return int(min(max(int(1.5 * est_bytes), 16 * _MIB), ceiling))


def _bf16_eup_ok():
    # v6e / v7x have bf16 VPU+EUP; keep f32 exp on v5e and older generations.
    try:
        kind = jax.devices()[0].device_kind.lower()
    except Exception:
        return False
    return not any(v in kind for v in ("v2", "v3", "v4", "v5"))


def _tiles_and_pad(hw, tq_pref, tk_pref, tp_pref):
    """Tiles are multiples of 128; HW is padded so every tile divides it (no full-HW fallback)."""
    base = _round_up(hw, LANE)
    tq = min(_round_up(tq_pref, LANE), base)
    tk = min(_round_up(tk_pref, LANE), base)
    tp = min(_round_up(tp_pref, LANE), base)
    hwp = _round_up(hw, math.lcm(tq, tk, tp))
    return tq, tk, tp, hwp


def spatial_self_attention(x_nchw, params, *, tq=512, tk=512, t_proj=512):
    """x_nchw: (B, C, H, W) float32. params follow PyTorch conventions."""
    B, C, H, W = x_nchw.shape
    assert C % NUM_GROUPS == 0, "GroupNorm(32) requires channels divisible by 32"
    HW = H * W
    Cp = _round_up(C, LANE)                    # lane-dense channel padding
    tq_, tk_, tp_, HWp = _tiles_and_pad(HW, tq, tk, t_proj)
    n_q, n_kv, n_p = HWp // tq_, HWp // tk_, HWp // tp_
    mask_keys = (HWp != HW)
    bf16_exp = _bf16_eup_ok()

    x_f32 = x_nchw.astype(jnp.float32)

    # ---- GroupNorm statistics: cheap centered two-pass reduction in plain JAX ----
    gamma = params["gamma"].reshape(C).astype(jnp.float32)
    beta = params["beta"].reshape(C).astype(jnp.float32)
    cg = C // NUM_GROUPS
    xg = x_f32.reshape(B, NUM_GROUPS, cg * HW)
    g_mean = jnp.mean(xg, axis=-1)                                   # (B, G)
    g_var = jnp.mean(jnp.square(xg - g_mean[..., None]), axis=-1)    # biased, matches torch
    mean_c = jnp.repeat(g_mean, cg, axis=-1)                         # (B, C)
    var_c = jnp.repeat(g_var, cg, axis=-1)
    inv_std = jax.lax.rsqrt(var_c + EPS)
    gn_scale = inv_std * gamma[None, :]                              # (B, C)
    gn_shift = beta[None, :] - mean_c * gn_scale                     # (B, C)

    def pad_c_last(a):
        if Cp == C:
            return a
        return jnp.pad(a, [(0, 0)] * (a.ndim - 1) + [(0, Cp - C)])

    gn_scale = pad_c_last(gn_scale).reshape(B, 1, Cp)
    gn_shift = pad_c_last(gn_shift).reshape(B, 1, Cp)

    # tokens: (B, HWp, Cp), channels on lanes; padded token rows are masked on the key side
    x_tok = pad_c_last(jnp.transpose(x_f32.reshape(B, C, HW), (0, 2, 1)))  # f32
    if HWp != HW:
        x_tok = jnp.pad(x_tok, ((0, 0), (0, HWp - HW), (0, 0)))

    # weights: torch (C_out, C_in, 1, 1) -> (C_in, C_out), zero-padded to (Cp, Cp)
    def wt(w):
        w = jnp.asarray(w, jnp.float32).reshape(C, C).T
        return jnp.pad(w, ((0, Cp - C), (0, Cp - C)))

    def bias(b):
        return pad_c_last(jnp.asarray(b, jnp.float32).reshape(1, C))

    attn_scale = float(C) ** (-0.5)
    wq, bq = wt(params["wq"]) * attn_scale, bias(params["bq"]) * attn_scale  # fold 1/sqrt(C)
    wk, bk = wt(params["wk"]), bias(params["bk"])
    wv, bv = wt(params["wv"]), bias(params["bv"])
    wp, bp = wt(params["wp"]), bias(params["bp"])

    wqkv = jnp.concatenate([wq, wk, wv], axis=1).astype(jnp.bfloat16)   # (Cp, 3Cp) bf16
    bqkv = jnp.concatenate([bq, bk, bv], axis=1)                        # (1, 3Cp) f32
    wp_bf = wp.astype(jnp.bfloat16)

    # ---- pass 1: GroupNorm-apply + q/k/v projections ----
    qkv_vmem = (2 * (tp_ * Cp * 4 + 2 * Cp * 4 + Cp * 3 * Cp * 2 + 3 * Cp * 4
                     + 3 * tp_ * Cp * 2)
                + tp_ * 3 * Cp * 4)                                  # in-kernel f32 intermediate
    q_all, k_all, v_all = pl.pallas_call(
        _qkv_kernel,
        out_shape=tuple(jax.ShapeDtypeStruct((B, HWp, Cp), jnp.bfloat16) for _ in range(3)),
        grid=(B, n_p),
        in_specs=[
            pl.BlockSpec((1, tp_, Cp), lambda b, t: (b, t, 0)),      # x tokens
            pl.BlockSpec((1, 1, Cp), lambda b, t: (b, 0, 0)),        # gn scale
            pl.BlockSpec((1, 1, Cp), lambda b, t: (b, 0, 0)),        # gn shift
            pl.BlockSpec((Cp, 3 * Cp), lambda b, t: (0, 0)),         # wqkv (grid constant)
            pl.BlockSpec((1, 3 * Cp), lambda b, t: (0, 0)),          # bqkv
        ],
        out_specs=tuple(pl.BlockSpec((1, tp_, Cp), lambda b, t: (b, t, 0)) for _ in range(3)),
        compiler_params=pltpu.CompilerParams(
            dimension_semantics=("parallel", "parallel"),
            vmem_limit_bytes=_clamp_vmem(qkv_vmem)),
    )(x_tok, gn_scale, gn_shift, wqkv, bqkv)

    # ---- pass 2: flash-style spatial attention + proj + residual (K/V resident per batch) ----
    attn_vmem = (2 * (tq_ * Cp * 2                    # q tile (double-buffered)
                      + 2 * HWp * Cp * 2              # resident full-HW K + V
                      + tq_ * Cp * 4                  # residual tile
                      + Cp * Cp * 2 + Cp * 4          # wp, bp
                      + tq_ * Cp * 4)                 # output tile
                 + tq_ * Cp * 4 + 2 * tq_ * 4         # scratch acc / m / l
                 + 2 * tq_ * tk_ * 4)                 # s / p temporaries
    flash = functools.partial(_flash_attn_kernel, tk=tk_, hw=HW,
                              mask_keys=mask_keys, bf16_exp=bf16_exp)
    out_tok = pl.pallas_call(
        flash,
        out_shape=jax.ShapeDtypeStruct((B, HWp, Cp), jnp.float32),
        grid=(B, n_q, n_kv),
        in_specs=[
            pl.BlockSpec((1, tq_, Cp), lambda b, qi, ki: (b, qi, 0)),   # q tile
            pl.BlockSpec((1, HWp, Cp), lambda b, qi, ki: (b, 0, 0)),    # K: full-HW resident
            pl.BlockSpec((1, HWp, Cp), lambda b, qi, ki: (b, 0, 0)),    # V: full-HW resident
            pl.BlockSpec((1, tq_, Cp), lambda b, qi, ki: (b, qi, 0)),   # x residual tile
            pl.BlockSpec((Cp, Cp), lambda b, qi, ki: (0, 0)),           # wp
            pl.BlockSpec((1, Cp), lambda b, qi, ki: (0, 0)),            # bp
        ],
        out_specs=pl.BlockSpec((1, tq_, Cp), lambda b, qi, ki: (b, qi, 0)),
        scratch_shapes=[
            pltpu.VMEM((tq_, 1), jnp.float32),    # running max
            pltpu.VMEM((tq_, 1), jnp.float32),    # running sum
            pltpu.VMEM((tq_, Cp), jnp.float32),   # output accumulator
        ],
        compiler_params=pltpu.CompilerParams(
            dimension_semantics=("parallel", "parallel", "arbitrary"),
            vmem_limit_bytes=_clamp_vmem(attn_vmem)),
    )(q_all, k_all, v_all, x_tok, wp_bf, bp)

    # back to NCHW, drop channel / token padding
    out = out_tok[:, :HW, :C]
    return jnp.transpose(out, (0, 2, 1)).reshape(B, C, H, W)


# ----------------------------- reference --------------------------------------


def reference_forward(x, params):
    """Pure-JAX f32 reference mirroring the PyTorch module exactly (NCHW)."""
    B, C, H, W = x.shape
    cg = C // NUM_GROUPS
    xg = x.reshape(B, NUM_GROUPS, cg, H, W)
    mean = xg.mean(axis=(2, 3, 4), keepdims=True)
    var = xg.var(axis=(2, 3, 4), keepdims=True)
    hn = (xg - mean) / jnp.sqrt(var + EPS)
    hn = hn.reshape(B, C, H, W) * params["gamma"].reshape(1, C, 1, 1) \
         + params["beta"].reshape(1, C, 1, 1)

    def conv1x1(z, w, b):
        return jnp.einsum('bchw,oc->bohw', z, w.reshape(C, C)) + b.reshape(1, C, 1, 1)

    q = conv1x1(hn, params["wq"], params["bq"])
    k = conv1x1(hn, params["wk"], params["bk"])
    v = conv1x1(hn, params["wv"], params["bv"])

    q_ = jnp.transpose(q.reshape(B, C, H * W), (0, 2, 1))    # b (hw) c
    k_ = k.reshape(B, C, H * W)                               # b c (hw)
    w_ = jnp.einsum('bij,bjk->bik', q_, k_) * (int(C) ** (-0.5))
    w_ = jax.nn.softmax(w_, axis=2)
    v_ = v.reshape(B, C, H * W)
    w_t = jnp.transpose(w_, (0, 2, 1))
    h_ = jnp.einsum('bij,bjk->bik', v_, w_t).reshape(B, C, H, W)
    h_ = conv1x1(h_, params["wp"], params["bp"])
    return x + h_


if __name__ == "__main__":
    # C=96 exercises the channel->128 lane padding path; HW=1024 with tq=tk=512 exercises the
    # multi-tile flash loop over the resident K/V blocks (n_q = n_kv = 2, B*n_q = 4 parallel).
    B, C, H, W = 2, 96, 32, 32

    key = jax.random.PRNGKey(0)
    ks = jax.random.split(key, 11)
    params = {
        "gamma": 1.0 + 0.1 * jax.random.normal(ks[0], (C,), jnp.float32),
        "beta": 0.1 * jax.random.normal(ks[1], (C,), jnp.float32),
        "wq": 0.1 * jax.random.normal(ks[2], (C, C), jnp.float32),
        "bq": 0.1 * jax.random.normal(ks[3], (C,), jnp.float32),
        "wk": 0.1 * jax.random.normal(ks[4], (C, C), jnp.float32),
        "bk": 0.1 * jax.random.normal(ks[5], (C,), jnp.float32),
        "wv": 0.1 * jax.random.normal(ks[6], (C, C), jnp.float32),
        "bv": 0.1 * jax.random.normal(ks[7], (C,), jnp.float32),
        "wp": 0.1 * jax.random.normal(ks[8], (C, C), jnp.float32),
        "bp": 0.1 * jax.random.normal(ks[9], (C,), jnp.float32),
    }
    x = jax.random.normal(ks[10], (B, C, H, W), jnp.float32)

    out = jax.block_until_ready(spatial_self_attention(x, params))
    ref = jax.block_until_ready(reference_forward(x, params))

    assert out.shape == (B, C, H, W)
    max_err = float(jnp.max(jnp.abs(out - ref)))
    # bf16 MXU operands + (possibly) bf16 exp + approx reciprocal -> looser tolerance than f32
    assert jnp.allclose(out, ref, atol=7.5e-2, rtol=7.5e-2), f"max abs err {max_err}"

    print("KERNEL_OK")
</pallas_src>

<mosaic_0001>
module attributes {stable_mosaic.version = 11 : i64} {
  func.func @_qkv_kernel(%arg0: i32, %arg1: i32, %arg2: memref<1x512x128xf32, #tpu.memory_space<vmem>>, %arg3: memref<1x1x128xf32, #tpu.memory_space<vmem>>, %arg4: memref<1x1x128xf32, #tpu.memory_space<vmem>>, %arg5: memref<128x384xbf16, #tpu.memory_space<vmem>>, %arg6: memref<1x384xf32, #tpu.memory_space<vmem>>, %arg7: memref<1x512x128xbf16, #tpu.memory_space<vmem>>, %arg8: memref<1x512x128xbf16, #tpu.memory_space<vmem>>, %arg9: memref<1x512x128xbf16, #tpu.memory_space<vmem>>) attributes {dimension_semantics = [#tpu.dimension_semantics<parallel>, #tpu.dimension_semantics<parallel>], iteration_bounds = array<i64: 2, 2>, scalar_prefetch = 0 : i64, scratch_operands = 0 : i64, tpu.core_type = #tpu.core_type<tc>, window_params = [{transform_indices = @transform_0, window_bounds = array<i64: 1, 512, 128>}, {transform_indices = @transform_1, window_bounds = array<i64: 1, 1, 128>}, {transform_indices = @transform_2, window_bounds = array<i64: 1, 1, 128>}, {pipeline_mode = #tpu.pipeline_mode<synchronous>, transform_indices = @transform_3, window_bounds = array<i64: 128, 384>}, {pipeline_mode = #tpu.pipeline_mode<synchronous>, transform_indices = @transform_4, window_bounds = array<i64: 1, 384>}, {transform_indices = @transform_5, window_bounds = array<i64: 1, 512, 128>}, {transform_indices = @transform_6, window_bounds = array<i64: 1, 512, 128>}, {transform_indices = @transform_7, window_bounds = array<i64: 1, 512, 128>}]} {
    %c0 = arith.constant 0 : index
    %c0_0 = arith.constant 0 : index
    %c0_1 = arith.constant 0 : index
    %0 = vector.load %arg2[%c0, %c0_0, %c0_1] : memref<1x512x128xf32, #tpu.memory_space<vmem>>, vector<1x512x128xf32>
    %1 = vector.shape_cast %0 : vector<1x512x128xf32> to vector<512x128xf32>
    %c0_2 = arith.constant 0 : index
    %c0_3 = arith.constant 0 : index
    %c0_4 = arith.constant 0 : index
    %2 = vector.load %arg3[%c0_2, %c0_3, %c0_4] : memref<1x1x128xf32, #tpu.memory_space<vmem>>, vector<1x1x128xf32>
    %3 = vector.shape_cast %2 : vector<1x1x128xf32> to vector<1x128xf32>
    %4 = vector.broadcast %3 : vector<1x128xf32> to vector<512x128xf32>
    %5 = arith.mulf %1, %4 : vector<512x128xf32>
    %c0_5 = arith.constant 0 : index
    %c0_6 = arith.constant 0 : index
    %c0_7 = arith.constant 0 : index
    %6 = vector.load %arg4[%c0_5, %c0_6, %c0_7] : memref<1x1x128xf32, #tpu.memory_space<vmem>>, vector<1x1x128xf32>
    %7 = vector.shape_cast %6 : vector<1x1x128xf32> to vector<1x128xf32>
    %8 = vector.broadcast %7 : vector<1x128xf32> to vector<512x128xf32>
    %9 = arith.addf %5, %8 : vector<512x128xf32>
    %10 = arith.truncf %9 : vector<512x128xf32> to vector<512x128xbf16>
    %c0_8 = arith.constant 0 : index
    %c0_9 = arith.constant 0 : index
    %11 = vector.load %arg5[%c0_8, %c0_9] : memref<128x384xbf16, #tpu.memory_space<vmem>>, vector<128x384xbf16>
    %cst = arith.constant dense<0.000000e+00> : vector<512x384xf32>
    %12 = tpu.matmul %10, %11, %cst {dimension_numbers = #tpu.dot_dimension_numbers<[1], [0], [0], [1], [0, 0, 1, 1], [], []>} : vector<512x128xbf16>, vector<128x384xbf16>, vector<512x384xf32> -> vector<512x384xf32>
    %c0_10 = arith.constant 0 : index
    %c0_11 = arith.constant 0 : index
    %13 = vector.load %arg6[%c0_10, %c0_11] : memref<1x384xf32, #tpu.memory_space<vmem>>, vector<1x384xf32>
    %14 = vector.broadcast %13 : vector<1x384xf32> to vector<512x384xf32>
    %15 = arith.addf %12, %14 : vector<512x384xf32>
    %16 = arith.truncf %15 : vector<512x384xf32> to vector<512x384xbf16>
    %17 = vector.extract_strided_slice %16 {offsets = [0, 0], sizes = [512, 128], strides = [1, 1]} : vector<512x384xbf16> to vector<512x128xbf16>
    %c0_12 = arith.constant 0 : index
    %c0_13 = arith.constant 0 : index
    %c0_14 = arith.constant 0 : index
    %18 = vector.load %arg7[%c0_12, %c0_13, %c0_14] : memref<1x512x128xbf16, #tpu.memory_space<vmem>>, vector<1x512x128xbf16>
    %19 = vector.shape_cast %18 : vector<1x512x128xbf16> to vector<512x128xbf16>
    %20 = vector.shape_cast %17 : vector<512x128xbf16> to vector<1x512x128xbf16>
    tpu.vector_store %arg7[%c0_12, %c0_13, %c0_14], %20 {strides = array<i32>} : memref<1x512x128xbf16, #tpu.memory_space<vmem>>, vector<1x512x128xbf16>,
    %21 = vector.extract_strided_slice %16 {offsets = [0, 128], sizes = [512, 128], strides = [1, 1]} : vector<512x384xbf16> to vector<512x128xbf16>
    %c0_15 = arith.constant 0 : index
    %c0_16 = arith.constant 0 : index
    %c0_17 = arith.constant 0 : index
    %22 = vector.load %arg8[%c0_15, %c0_16, %c0_17] : memref<1x512x128xbf16, #tpu.memory_space<vmem>>, vector<1x512x128xbf16>
    %23 = vector.shape_cast %22 : vector<1x512x128xbf16> to vector<512x128xbf16>
    %24 = vector.shape_cast %21 : vector<512x128xbf16> to vector<1x512x128xbf16>
    tpu.vector_store %arg8[%c0_15, %c0_16, %c0_17], %24 {strides = array<i32>} : memref<1x512x128xbf16, #tpu.memory_space<vmem>>, vector<1x512x128xbf16>,
    %25 = vector.extract_strided_slice %16 {offsets = [0, 256], sizes = [512, 128], strides = [1, 1]} : vector<512x384xbf16> to vector<512x128xbf16>
    %c0_18 = arith.constant 0 : index
    %c0_19 = arith.constant 0 : index
    %c0_20 = arith.constant 0 : index
    %26 = vector.load %arg9[%c0_18, %c0_19, %c0_20] : memref<1x512x128xbf16, #tpu.memory_space<vmem>>, vector<1x512x128xbf16>
    %27 = vector.shape_cast %26 : vector<1x512x128xbf16> to vector<512x128xbf16>
    %28 = vector.shape_cast %25 : vector<512x128xbf16> to vector<1x512x128xbf16>
    tpu.vector_store %arg9[%c0_18, %c0_19, %c0_20], %28 {strides = array<i32>} : memref<1x512x128xbf16, #tpu.memory_space<vmem>>, vector<1x512x128xbf16>,
    return
  }
  func.func @transform_0(%arg0: i32, %arg1: i32) -> (i32, i32, i32) {
    %c0_i32 = arith.constant 0 : i32
    %c0_i32_0 = arith.constant 0 : i32
    return %arg0, %arg1, %c0_i32 : i32, i32, i32
  }
  func.func @transform_1(%arg0: i32, %arg1: i32) -> (i32, i32, i32) {
    %c0_i32 = arith.constant 0 : i32
    %c0_i32_0 = arith.constant 0 : i32
    %c0_i32_1 = arith.constant 0 : i32
    return %arg0, %c0_i32, %c0_i32_0 : i32, i32, i32
  }
  func.func @transform_2(%arg0: i32, %arg1: i32) -> (i32, i32, i32) {
    %c0_i32 = arith.constant 0 : i32
    %c0_i32_0 = arith.constant 0 : i32
    %c0_i32_1 = arith.constant 0 : i32
    return %arg0, %c0_i32, %c0_i32_0 : i32, i32, i32
  }
  func.func @transform_3(%arg0: i32, %arg1: i32) -> (i32, i32) {
    %c0_i32 = arith.constant 0 : i32
    %c0_i32_0 = arith.constant 0 : i32
    %c0_i32_1 = arith.constant 0 : i32
    return %c0_i32, %c0_i32_0 : i32, i32
  }
  func.func @transform_4(%arg0: i32, %arg1: i32) -> (i32, i32) {
    %c0_i32 = arith.constant 0 : i32
    %c0_i32_0 = arith.constant 0 : i32
    %c0_i32_1 = arith.constant 0 : i32
    return %c0_i32, %c0_i32_0 : i32, i32
  }
  func.func @transform_5(%arg0: i32, %arg1: i32) -> (i32, i32, i32) {
    %c0_i32 = arith.constant 0 : i32
    %c0_i32_0 = arith.constant 0 : i32
    return %arg0, %arg1, %c0_i32 : i32, i32, i32
  }
  func.func @transform_6(%arg0: i32, %arg1: i32) -> (i32, i32, i32) {
    %c0_i32 = arith.constant 0 : i32
    %c0_i32_0 = arith.constant 0 : i32
    return %arg0, %arg1, %c0_i32 : i32, i32, i32
  }
  func.func @transform_7(%arg0: i32, %arg1: i32) -> (i32, i32, i32) {
    %c0_i32 = arith.constant 0 : i32
    %c0_i32_0 = arith.constant 0 : i32
    return %arg0, %arg1, %c0_i32 : i32, i32, i32
  }
}

</mosaic_0001>

<llo_original>
// kernel: tpu_custom_call.1
$region0: #{tpu_custom_call.1}
  #allocation0 [shape = 'u32[]', space=smem, size = 0x4, offset = 0x4, fixed_abs, tag = 'smem constant byte address 0x4 - core index']
  #allocation1 [shape = 'u32[72,128]{1,0:T(1,128)}', space=vmem, size = 0x9000, scoped, tag = 'internal scratch']
  %s0 = inlined_call_operand.hbm [shape: f32[2,1024,128], index: 0, kind: input, shape index: {}]
  %s1 = inlined_call_operand.hbm [shape: f32[2,1,128], index: 1, kind: input, shape index: {}]
  %s2 = inlined_call_operand.hbm [shape: f32[2,1,128], index: 2, kind: input, shape index: {}]
  %s3 = inlined_call_operand.hbm [shape: bf16[128,384], index: 3, kind: input, shape index: {}]
  %s4 = inlined_call_operand.vmem [shape: f32[1,384], index: 4, kind: input, shape index: {}]
  %s5 = inlined_call_operand.hbm [shape: bf16[2,1024,128], index: 5, kind: output, shape index: {0}]
  %s6 = inlined_call_operand.hbm [shape: bf16[2,1024,128], index: 6, kind: output, shape index: {1}]
  %s7 = inlined_call_operand.hbm [shape: bf16[2,1024,128], index: 7, kind: output, shape index: {2}]
  %8 = xla_tuple %s5, %s6, %s7
  %s9 = sld [smem:[#allocation0]]
  $region85: #{tpu_custom_call.1} parent=0
    _
  %s11 = ssub.s32 1, %s9
  %s12 = scalar_select 0, %s11, %s9
  $region1: #{tpu_custom_call.1} parent=0
    #allocation2 [shape = 'u8[524288]{0}', space=vmem, size = 0x80000, scoped, tag = 'input window, operand 0']
    #allocation3 [shape = 's32[2]{0}', space=sflag, size = 0x8, scoped, tag = 'scoped memory for tpu_custom_call.1']
    #allocation4 [shape = 's32[2]{0}', space=sflag, size = 0x8, scoped, tag = 'scoped memory for tpu_custom_call.1']
    #allocation5 [shape = 'u8[1024]{0}', space=vmem, size = 0x400, scoped, tag = 'input window, operand 1']
    #allocation6 [shape = 's32[2]{0}', space=sflag, size = 0x8, scoped, tag = 'scoped memory for tpu_custom_call.1']
    #allocation7 [shape = 'u8[1024]{0}', space=vmem, size = 0x400, scoped, tag = 'input window, operand 2']
    #allocation8 [shape = 'u8[98304]{0}', space=vmem, size = 0x18000, scoped, tag = 'input window, operand 3, single buffered']
    #allocation9 [shape = 's32[1]{0}', space=sflag, size = 0x4, scoped, tag = 'scoped memory for tpu_custom_call.1']
    #allocation10 [shape = 'u8[262144]{0}', space=vmem, size = 0x40000, scoped, tag = 'output window, operand 0']
    #allocation11 [shape = 'u8[262144]{0}', space=vmem, size = 0x40000, scoped, tag = 'output window, operand 1']
    #allocation12 [shape = 's32[2]{0}', space=sflag, size = 0x8, scoped, tag = 'scoped memory for tpu_custom_call.1']
    #allocation13 [shape = 'u8[262144]{0}', space=vmem, size = 0x40000, scoped, tag = 'output window, operand 2']
    %13 = vsyncpa [#allocation3], 0
    %s14 = scalar_lea.sflag [#allocation3], 1
    %15 = vsyncpa %s14, 0
    %16 = vsyncpa [#allocation6], 0
    %s17 = scalar_lea.sflag [#allocation6], 1
    %18 = vsyncpa %s17, 0
    %19 = vsyncpa [#allocation9], 0
    %20 = vsyncpa [#allocation4], 0
    %s21 = scalar_lea.sflag [#allocation4], 1
    %22 = vsyncpa %s21, 0
    %23 = vsyncpa [#allocation12], 0
    %s24 = scalar_lea.sflag [#allocation12], 1
    %25 = vsyncpa %s24, 0
    loop: start=0, step=1, limit=6
    $region2: #{tpu_custom_call.1} parent=1 // loop_pre_header
      _
    $region3: #{tpu_custom_call.1} parent=1 // loop_header
      %s27 = sphi 0, %s31
      %p28 = scmp.ge.s32.totalorder %s27, 6
      %s34 = sphi 0, %s46
      %s35 = sphi 0, %s42
      %s36 = sphi 0, %s34
      %s37 = sphi 0, %s35
      %s38 = sphi 0, %s36
      %s39 = sphi 0, %s37
      %s51 = sphi 0, %s53
      %s54 = sphi 0, %s51
      %s55 = sphi 0, %s54
      %s71 = sphi 0, %s55
      %s77 = sphi 0, %s79
      %s80 = sphi 0, %s77
      %s81 = sphi 0, %s80
      %s97 = sphi 0, %s81
      %s103 = sphi 0, %s105
      %s106 = sphi 0, %s103
      %s107 = sphi 0, %s106
      %s123 = sphi 0, %s107
      %s127 = sphi 0, %s127
      %s129 = sphi 0, %s127
      %s130 = sphi 0, %s129
      %s144 = sphi 0, %s130
      %s148 = sphi 0, %s148
      %s150 = sphi 0, %s148
      %s151 = sphi 0, %s150
      %s165 = sphi 0, %s151
      %s173 = sphi 0, %s175
      %s176 = sphi 0, %s173
      %s177 = sphi 0, %s176
      %s193 = sphi 0, %s177
      %s201 = sphi 0, %s203
      %s204 = sphi 0, %s201
      %s205 = sphi 0, %s204
      %s221 = sphi 0, %s205
      %s229 = sphi 0, %s231
      %s232 = sphi 0, %s229
      %s233 = sphi 0, %s232
      %s249 = sphi 0, %s233
    $region4: #{tpu_custom_call.1} parent=1 // loop_header_branch
      %30 = sbr.rel (%p28) target = $region8
    $region5: #{tpu_custom_call.1} parent=1 // loop_body
      %s32 = ssub.s32 %s27, 1
      %s33 = ssub.s32 %s27, 2
      %s40 = sadd.s32 1, %s35
      %p41 = scmp.ge.s32.totalorder %s40, 2
      %s42 = scalar_select %p41, 0, %s40
      %s43 = sadd.s32 1, %s34
      %s44 = scalar_select %p41, %s43, %s34
      %p45 = scmp.ge.s32.totalorder %s44, 2
      %s46 = scalar_select %p45, 0, %s44
      %s47 = ssub.s32 %s34, %s46
      %s48 = ssub.s32 %s35, %s42
      %s49 = sor.u32 %s47, %s48
      %p50 = scmp.eq.s32.totalorder %s49, 0
      %s52 = sadd.s32 %s51, 1
      %s53 = scalar_select %p50, %s51, %s52
      %p56 = pneg %p50
      %p57 = scmp.eq.s32.totalorder %s27, 3
      %p58 = por %p56, %p57
      %p59 = scmp.ne.s32.totalorder %s51, %s54
      %p60 = scmp.eq.s32.totalorder %s27, 0
      %p61 = por %p59, %p60
      %p62 = scmp.ne.s32.totalorder %s51, %s54
      %p63 = scmp.eq.s32.totalorder %s32, 3
      %p64 = por %p62, %p63
      %p65 = scmp.ne.s32.totalorder %s54, %s55
      %p66 = scmp.eq.s32.totalorder %s32, 0
      %p67 = por %p65, %p66
      %p68 = scmp.ne.s32.totalorder %s54, %s55
      %p69 = scmp.eq.s32.totalorder %s33, 3
      %p70 = por %p68, %p69
      %p72 = scmp.ne.s32.totalorder %s55, %s71
      %p73 = scmp.eq.s32.totalorder %s33, 0
      %p74 = por %p72, %p73
      %s75 = ssub.s32 %s34, %s46
      %p76 = scmp.eq.s32.totalorder %s75, 0
      %s78 = sadd.s32 %s77, 1
      %s79 = scalar_select %p76, %s77, %s78
      %p82 = pneg %p76
      %p83 = scmp.eq.s32.totalorder %s27, 3
      %p84 = por %p82, %p83
      %p85 = scmp.ne.s32.totalorder %s77, %s80
      %p86 = scmp.eq.s32.totalorder %s27, 0
      %p87 = por %p85, %p86
      %p88 = scmp.ne.s32.totalorder %s77, %s80
      %p89 = scmp.eq.s32.totalorder %s32, 3
      %p90 = por %p88, %p89
      %p91 = scmp.ne.s32.totalorder %s80, %s81
      %p92 = scmp.eq.s32.totalorder %s32, 0
      %p93 = por %p91, %p92
      %p94 = scmp.ne.s32.totalorder %s80, %s81
      %p95 = scmp.eq.s32.totalorder %s33, 3
      %p96 = por %p94, %p95
      %p98 = scmp.ne.s32.totalorder %s81, %s97
      %p99 = scmp.eq.s32.totalorder %s33, 0
      %p100 = por %p98, %p99
      %s101 = ssub.s32 %s34, %s46
      %p102 = scmp.eq.s32.totalorder %s101, 0
      %s104 = sadd.s32 %s103, 1
      %s105 = scalar_select %p102, %s103, %s104
      %p108 = pneg %p102
      %p109 = scmp.eq.s32.totalorder %s27, 3
      %p110 = por %p108, %p109
      %p111 = scmp.ne.s32.totalorder %s103, %s106
      %p112 = scmp.eq.s32.totalorder %s27, 0
      %p113 = por %p111, %p112
      %p114 = scmp.ne.s32.totalorder %s103, %s106
      %p115 = scmp.eq.s32.totalorder %s32, 3
      %p116 = por %p114, %p115
      %p117 = scmp.ne.s32.totalorder %s106, %s107
      %p118 = scmp.eq.s32.totalorder %s32, 0
      %p119 = por %p117, %p118
      %p120 = scmp.ne.s32.totalorder %s106, %s107
      %p121 = scmp.eq.s32.totalorder %s33, 3
      %p122 = por %p120, %p121
      %p124 = scmp.ne.s32.totalorder %s107, %s123
      %p125 = scmp.eq.s32.totalorder %s33, 0
      %p126 = por %p124, %p125
      %s128 = sadd.s32 %s127, 1
      %p131 = scmp.eq.s32.totalorder %s27, 3
      %p132 = scmp.ne.s32.totalorder %s127, %s129
      %p133 = scmp.eq.s32.totalorder %s27, 0
      %p134 = por %p132, %p133
      %p135 = scmp.ne.s32.totalorder %s127, %s129
      %p136 = scmp.eq.s32.totalorder %s32, 3
      %p137 = por %p135, %p136
      %p138 = scmp.ne.s32.totalorder %s129, %s130
      %p139 = scmp.eq.s32.totalorder %s32, 0
      %p140 = por %p138, %p139
      %p141 = scmp.ne.s32.totalorder %s129, %s130
      %p142 = scmp.eq.s32.totalorder %s33, 3
      %p143 = por %p141, %p142
      %p145 = scmp.ne.s32.totalorder %s130, %s144
      %p146 = scmp.eq.s32.totalorder %s33, 0
      %p147 = por %p145, %p146
      %s149 = sadd.s32 %s148, 1
      %p152 = scmp.eq.s32.totalorder %s27, 3
      %p153 = scmp.ne.s32.totalorder %s148, %s150
      %p154 = scmp.eq.s32.totalorder %s27, 0
      %p155 = por %p153, %p154
      %p156 = scmp.ne.s32.totalorder %s148, %s150
      %p157 = scmp.eq.s32.totalorder %s32, 3
      %p158 = por %p156, %p157
      %p159 = scmp.ne.s32.totalorder %s150, %s151
      %p160 = scmp.eq.s32.totalorder %s32, 0
      %p161 = por %p159, %p160
      %p162 = scmp.ne.s32.totalorder %s150, %s151
      %p163 = scmp.eq.s32.totalorder %s33, 3
      %p164 = por %p162, %p163
      %p166 = scmp.ne.s32.totalorder %s151, %s165
      %p167 = scmp.eq.s32.totalorder %s33, 0
      %p168 = por %p166, %p167
      %s169 = ssub.s32 %s34, %s46
      %s170 = ssub.s32 %s35, %s42
      %s171 = sor.u32 %s169, %s170
      %p172 = scmp.eq.s32.totalorder %s171, 0
      %s174 = sadd.s32 %s173, 1
      %s175 = scalar_select %p172, %s173, %s174
      %p178 = pneg %p172
      %p179 = scmp.eq.s32.totalorder %s27, 3
      %p180 = por %p178, %p179
      %p181 = scmp.ne.s32.totalorder %s173, %s176
      %p182 = scmp.eq.s32.totalorder %s27, 0
      %p183 = por %p181, %p182
      %p184 = scmp.ne.s32.totalorder %s173, %s176
      %p185 = scmp.eq.s32.totalorder %s32, 3
      %p186 = por %p184, %p185
      %p187 = scmp.ne.s32.totalorder %s176, %s177
      %p188 = scmp.eq.s32.totalorder %s32, 0
      %p189 = por %p187, %p188
      %p190 = scmp.ne.s32.totalorder %s176, %s177
      %p191 = scmp.eq.s32.totalorder %s33, 3
      %p192 = por %p190, %p191
      %p194 = scmp.ne.s32.totalorder %s177, %s193
      %p195 = scmp.eq.s32.totalorder %s33, 0
      %p196 = por %p194, %p195
      %s197 = ssub.s32 %s34, %s46
      %s198 = ssub.s32 %s35, %s42
      %s199 = sor.u32 %s197, %s198
      %p200 = scmp.eq.s32.totalorder %s199, 0
      %s202 = sadd.s32 %s201, 1
      %s203 = scalar_select %p200, %s201, %s202
      %p206 = pneg %p200
      %p207 = scmp.eq.s32.totalorder %s27, 3
      %p208 = por %p206, %p207
      %p209 = scmp.ne.s32.totalorder %s201, %s204
      %p210 = scmp.eq.s32.totalorder %s27, 0
      %p211 = por %p209, %p210
      %p212 = scmp.ne.s32.totalorder %s201, %s204
      %p213 = scmp.eq.s32.totalorder %s32, 3
      %p214 = por %p212, %p213
      %p215 = scmp.ne.s32.totalorder %s204, %s205
      %p216 = scmp.eq.s32.totalorder %s32, 0
      %p217 = por %p215, %p216
      %p218 = scmp.ne.s32.totalorder %s204, %s205
      %p219 = scmp.eq.s32.totalorder %s33, 3
      %p220 = por %p218, %p219
      %p222 = scmp.ne.s32.totalorder %s205, %s221
      %p223 = scmp.eq.s32.totalorder %s33, 0
      %p224 = por %p222, %p223
      %s225 = ssub.s32 %s34, %s46
      %s226 = ssub.s32 %s35, %s42
      %s227 = sor.u32 %s225, %s226
      %p228 = scmp.eq.s32.totalorder %s227, 0
      %s230 = sadd.s32 %s229, 1
      %s231 = scalar_select %p228, %s229, %s230
      %p234 = pneg %p228
      %p235 = scmp.eq.s32.totalorder %s27, 3
      %p236 = por %p234, %p235
      %p237 = scmp.ne.s32.totalorder %s229, %s232
      %p238 = scmp.eq.s32.totalorder %s27, 0
      %p239 = por %p237, %p238
      %p240 = scmp.ne.s32.totalorder %s229, %s232
      %p241 = scmp.eq.s32.totalorder %s32, 3
      %p242 = por %p240, %p241
      %p243 = scmp.ne.s32.totalorder %s232, %s233
      %p244 = scmp.eq.s32.totalorder %s32, 0
      %p245 = por %p243, %p244
      %p246 = scmp.ne.s32.totalorder %s232, %s233
      %p247 = scmp.eq.s32.totalorder %s33, 3
      %p248 = por %p246, %p247
      %p250 = scmp.ne.s32.totalorder %s233, %s249
      %p251 = scmp.eq.s32.totalorder %s33, 0
      %p252 = por %p250, %p251
      %p253 = scmp.le.s32.totalorder 1, %s27
      %p254 = scmp.lt.s32.totalorder %s27, 5
      %p255 = pnand %p253, %p254
      %p256 = pneg %p255
      // Predicated region
      $region9: #{tpu_custom_call.1} parent=5 // pred_check
        _
      $region10: #{tpu_custom_call.1} parent=5 // pred_check_branch
        %258 = sbr.rel (%p255) target = $region12
      $region11: #{tpu_custom_call.1} parent=5 // pred_region
        %s259 = ssub.s32 %s27, 1
        // Predicated region
        $region13: #{tpu_custom_call.1} parent=11 // pred_check
          %p260 = pneg %p140
        $region14: #{tpu_custom_call.1} parent=11 // pred_check_branch
          %262 = sbr.rel (%p260) target = $region16
        $region15: #{tpu_custom_call.1} parent=11 // pred_region
          %264 = vsyncadd [#allocation9], 0
          %s265 = sshll.u32 %s3, 4
          %s266 = int_to_ptr.hbm [resolvable:$true] %s265
          %s267 = sshll.u32 [#allocation8], 4
          %s268 = int_to_ptr.vmem [resolvable:$true] %s267
          %273 = dma.hbm_to_vmem [thread:$0]  %s266, 3072, %s268, [#allocation9], 192, 192, 12
        $region16: #{tpu_custom_call.1} parent=11 // pred_fallthru
          _
        // Predicated region
        $region17: #{tpu_custom_call.1} parent=11 // pred_check
          %p274 = pneg %p161
        $region18: #{tpu_custom_call.1} parent=11 // pred_check_branch
          %276 = sbr.rel (%p274) target = $region20
        $region19: #{tpu_custom_call.1} parent=11 // pred_region
          _
        $region20: #{tpu_custom_call.1} parent=11 // pred_fallthru
          _
      $region12: #{tpu_custom_call.1} parent=5 // pred_fallthru
        _
      %p277 = scmp.lt.s32.totalorder %s27, 4
      // Predicated region
      $region21: #{tpu_custom_call.1} parent=5 // pred_check
        %p278 = pneg %p277
      $region22: #{tpu_custom_call.1} parent=5 // pred_check_branch
        %280 = sbr.rel (%p278) target = $region24
      $region23: #{tpu_custom_call.1} parent=5 // pred_region
        // Predicated region
        $region25: #{tpu_custom_call.1} parent=23 // pred_check
          %p281 = pneg %p61
        $region26: #{tpu_custom_call.1} parent=23 // pred_check_branch
          %283 = sbr.rel (%p281) target = $region28
        $region27: #{tpu_custom_call.1} parent=23 // pred_region
          %s284 = sand.u32 %s51, 1
          %s285 = scalar_lea.sflag [#allocation3], %s284
          %s286 = sand.u32 %s51, 1
          %s287 = smul.addr %s286, 512
          %s288 = scalar_lea.vmem [#allocation2], %s287
          %s289 = smul.u32 64, %s35
          %291 = vsyncadd %s285, 0
          %s292 = smul.addr %s34, 128
          %s293 = sadd.s32 %s289, %s292
          %s294 = smul.addr %s293, 8
          %s295 = scalar_lea.hbm %s0, %s294
          %s296 = sshll.u32 %s295, 4
          %s297 = int_to_ptr.hbm [resolvable:$true] %s296
          %s298 = sshll.u32 %s288, 4
          %s299 = int_to_ptr.vmem [resolvable:$true] %s298
          %304 = dma.hbm_to_vmem [thread:$0]  %s297, 8192, %s299, %s285, 128, 128, 8
        $region28: #{tpu_custom_call.1} parent=23 // pred_fallthru
          _
        // Predicated region
        $region29: #{tpu_custom_call.1} parent=23 // pred_check
          %p305 = pneg %p87
        $region30: #{tpu_custom_call.1} parent=23 // pred_check_branch
          %307 = sbr.rel (%p305) target = $region32
        $region31: #{tpu_custom_call.1} parent=23 // pred_region
          %s308 = sand.u32 %s27, 1
          %s309 = scalar_lea.sflag [#allocation6], %s308
          %s310 = sand.u32 %s77, 1
          %s311 = scalar_lea.vmem [#allocation5], %s310
          %313 = vsyncadd %s309, 0
          %s314 = scalar_lea.hbm %s1, %s34
          %s316 = sshll.u32 %s314, 4
          %s317 = int_to_ptr.hbm [resolvable:$true] %s316
          %s318 = sshll.u32 %s311, 4
          %s319 = int_to_ptr.vmem [resolvable:$true] %s318
          %321 = dma.hbm_to_vmem [thread:$0]  %s317, 16, %s319, %s309
        $region32: #{tpu_custom_call.1} parent=23 // pred_fallthru
          _
        // Predicated region
        $region33: #{tpu_custom_call.1} parent=23 // pred_check
          %p322 = pneg %p113
        $region34: #{tpu_custom_call.1} parent=23 // pred_check_branch
          %324 = sbr.rel (%p322) target = $region36
        $region35: #{tpu_custom_call.1} parent=23 // pred_region
          %s325 = sand.u32 %s27, 1
          %s326 = scalar_lea.sflag [#allocation6], %s325
          %s327 = sand.u32 %s103, 1
          %s328 = scalar_lea.vmem [#allocation7], %s327
          %330 = vsyncadd %s326, 0
          %s331 = scalar_lea.hbm %s2, %s34
          %s333 = sshll.u32 %s331, 4
          %s334 = int_to_ptr.hbm [resolvable:$true] %s333
          %s335 = sshll.u32 %s328, 4
          %s336 = int_to_ptr.vmem [resolvable:$true] %s335
          %338 = dma.hbm_to_vmem [thread:$0]  %s334, 16, %s336, %s326
        $region36: #{tpu_custom_call.1} parent=23 // pred_fallthru
          _
      $region24: #{tpu_custom_call.1} parent=5 // pred_fallthru
        _
      %p339 = scmp.le.s32.totalorder 1, %s27
      %p340 = scmp.lt.s32.totalorder %s27, 5
      %p341 = pnand %p339, %p340
      %p342 = pneg %p341
      // Predicated region
      $region37: #{tpu_custom_call.1} parent=5 // pred_check
        _
      $region38: #{tpu_custom_call.1} parent=5 // pred_check_branch
        %344 = sbr.rel (%p341) target = $region40
      $region39: #{tpu_custom_call.1} parent=5 // pred_region
        %s345 = ssub.s32 %s27, 1
        %s346 = sand.u32 %s54, 1
        %s347 = scalar_lea.sflag [#allocation3], %s346
        %s348 = sand.u32 %s54, 1
        %s349 = smul.addr %s348, 512
        %s350 = scalar_lea.vmem [#allocation2], %s349
        // Predicated region
        $region41: #{tpu_custom_call.1} parent=39 // pred_check
          %p351 = pneg %p67
        $region42: #{tpu_custom_call.1} parent=39 // pred_check_branch
          %353 = sbr.rel (%p351) target = $region44
        $region43: #{tpu_custom_call.1} parent=39 // pred_region
          %355 = dma.done %s347, 8192
        $region44: #{tpu_custom_call.1} parent=39 // pred_fallthru
          _
        %s356 = sand.u32 %s32, 1
        %s357 = scalar_lea.sflag [#allocation6], %s356
        %s358 = sand.u32 %s80, 1
        %s359 = scalar_lea.vmem [#allocation5], %s358
        // Predicated region
        $region45: #{tpu_custom_call.1} parent=39 // pred_check
          %p360 = pneg %p93
        $region46: #{tpu_custom_call.1} parent=39 // pred_check_branch
          %362 = sbr.rel (%p360) target = $region48
        $region47: #{tpu_custom_call.1} parent=39 // pred_region
          %364 = dma.done %s357, 16
        $region48: #{tpu_custom_call.1} parent=39 // pred_fallthru
          _
        %s365 = sand.u32 %s32, 1
        %s366 = scalar_lea.sflag [#allocation6], %s365
        %s367 = sand.u32 %s106, 1
        %s368 = scalar_lea.vmem [#allocation7], %s367
        // Predicated region
        $region49: #{tpu_custom_call.1} parent=39 // pred_check
          %p369 = pneg %p119
        $region50: #{tpu_custom_call.1} parent=39 // pred_check_branch
          %371 = sbr.rel (%p369) target = $region52
        $region51: #{tpu_custom_call.1} parent=39 // pred_region
          %373 = dma.done %s366, 16
        $region52: #{tpu_custom_call.1} parent=39 // pred_fallthru
          _
        // Predicated region
        $region53: #{tpu_custom_call.1} parent=39 // pred_check
          %p374 = pneg %p140
        $region54: #{tpu_custom_call.1} parent=39 // pred_check_branch
          %376 = sbr.rel (%p374) target = $region56
        $region55: #{tpu_custom_call.1} parent=39 // pred_region
          %378 = dma.done [#allocation9], 3072
        $region56: #{tpu_custom_call.1} parent=39 // pred_fallthru
          _
        %s379 = sand.u32 %s54, 1
        %s380 = scalar_lea.sflag [#allocation3], %s379
        %s381 = sand.u32 %s54, 1
        %s382 = smul.addr %s381, 512
        %s383 = scalar_lea.vmem [#allocation2], %s382
        %p384 = pneg %p67
        %p385 = pneg %p64
        %s386 = sand.u32 %s32, 1
        %s387 = scalar_lea.sflag [#allocation6], %s386
        %s388 = sand.u32 %s80, 1
        %s389 = scalar_lea.vmem [#allocation5], %s388
        %p390 = pneg %p93
        %p391 = pneg %p90
        %s392 = sand.u32 %s32, 1
        %s393 = scalar_lea.sflag [#allocation6], %s392
        %s394 = sand.u32 %s106, 1
        %s395 = scalar_lea.vmem [#allocation7], %s394
        %p396 = pneg %p119
        %p397 = pneg %p116
        %p398 = pneg %p140
        %p399 = pneg %p137
        %p400 = pneg %p161
        %p401 = pneg %p158
        %p402 = pneg %p189
        %p403 = pneg %p186
        %s404 = sand.u32 %s176, 1
        %s405 = scalar_lea.sflag [#allocation4], %s404
        %s406 = sand.u32 %s176, 1
        %s407 = smul.addr %s406, 256
        %s408 = scalar_lea.vmem [#allocation10], %s407
        %p409 = pneg %p217
        %p410 = pneg %p214
        %s411 = sand.u32 %s32, 1
        %s412 = scalar_lea.sflag [#allocation12], %s411
        %s413 = sand.u32 %s204, 1
        %s414 = smul.addr %s413, 256
        %s415 = scalar_lea.vmem [#allocation11], %s414
        %p416 = pneg %p245
        %p417 = pneg %p242
        %s418 = sand.u32 %s32, 1
        %s419 = scalar_lea.sflag [#allocation12], %s418
        %s420 = sand.u32 %s232, 1
        %s421 = smul.addr %s420, 256
        %s422 = scalar_lea.vmem [#allocation13], %s421
        %s423 = smul.u32 64, %s37
        %s424 = smul.u32 64, %s37
        %s425 = smul.u32 64, %s37
        %s426 = smul.u32 64, %s37
        %v427 = vld [vmem:[%s350] sm:$0xff]
        %v428 = vld [vmem:[%s350 + $0x8] sm:$0xff]
        %v429 = vld [vmem:[%s350 + $0x10] sm:$0xff]
        %v430 = vld [vmem:[%s350 + $0x18] sm:$0xff]
        %v431 = vld [vmem:[%s350 + $0x20] sm:$0xff]
        %v432 = vld [vmem:[%s350 + $0x28] sm:$0xff]
        %v433 = vld [vmem:[%s350 + $0x30] sm:$0xff]
        %v434 = vld [vmem:[%s350 + $0x38] sm:$0xff]
        %v435 = vld [vmem:[%s350 + $0x40] sm:$0xff]
        %v436 = vld [vmem:[%s350 + $0x48] sm:$0xff]
        %v437 = vld [vmem:[%s350 + $0x50] sm:$0xff]
        %v438 = vld [vmem:[%s350 + $0x58] sm:$0xff]
        %v439 = vld [vmem:[%s350 + $0x60] sm:$0xff]
        %v440 = vld [vmem:[%s350 + $0x68] sm:$0xff]
        %v441 = vld [vmem:[%s350 + $0x70] sm:$0xff]
        %v442 = vld [vmem:[%s350 + $0x78] sm:$0xff]
        %v443 = vld [vmem:[%s350 + $0x80] sm:$0xff]
        %v444 = vld [vmem:[%s350 + $0x88] sm:$0xff]
        %v445 = vld [vmem:[%s350 + $0x90] sm:$0xff]
        %v446 = vld [vmem:[%s350 + $0x98] sm:$0xff]
        %v447 = vld [vmem:[%s350 + $0xa0] sm:$0xff]
        %v448 = vld [vmem:[%s350 + $0xa8] sm:$0xff]
        %v449 = vld [vmem:[%s350 + $0xb0] sm:$0xff]
        %v450 = vld [vmem:[%s350 + $0xb8] sm:$0xff]
        %v451 = vld [vmem:[%s350 + $0xc0] sm:$0xff]
        %v452 = vld [vmem:[%s350 + $0xc8] sm:$0xff]
        %v453 = vld [vmem:[%s350 + $0xd0] sm:$0xff]
        %v454 = vld [vmem:[%s350 + $0xd8] sm:$0xff]
        %v455 = vld [vmem:[%s350 + $0xe0] sm:$0xff]
        %v456 = vld [vmem:[%s350 + $0xe8] sm:$0xff]
        %v457 = vld [vmem:[%s350 + $0xf0] sm:$0xff]
        %v458 = vld [vmem:[%s350 + $0xf8] sm:$0xff]
        %v459 = vld [vmem:[%s350 + $0x100] sm:$0xff]
        %v460 = vld [vmem:[%s350 + $0x108] sm:$0xff]
        %v461 = vld [vmem:[%s350 + $0x110] sm:$0xff]
        %v462 = vld [vmem:[%s350 + $0x118] sm:$0xff]
        %v463 = vld [vmem:[%s350 + $0x120] sm:$0xff]
        %v464 = vld [vmem:[%s350 + $0x128] sm:$0xff]
        %v465 = vld [vmem:[%s350 + $0x130] sm:$0xff]
        %v466 = vld [vmem:[%s350 + $0x138] sm:$0xff]
        %v467 = vld [vmem:[%s350 + $0x140] sm:$0xff]
        %v468 = vld [vmem:[%s350 + $0x148] sm:$0xff]
        %v469 = vld [vmem:[%s350 + $0x150] sm:$0xff]
        %v470 = vld [vmem:[%s350 + $0x158] sm:$0xff]
        %v471 = vld [vmem:[%s350 + $0x160] sm:$0xff]
        %v472 = vld [vmem:[%s350 + $0x168] sm:$0xff]
        %v473 = vld [vmem:[%s350 + $0x170] sm:$0xff]
        %v474 = vld [vmem:[%s350 + $0x178] sm:$0xff]
        %v475 = vld [vmem:[%s350 + $0x180] sm:$0xff]
        %v476 = vld [vmem:[%s350 + $0x188] sm:$0xff]
        %v477 = vld [vmem:[%s350 + $0x190] sm:$0xff]
        %v478 = vld [vmem:[%s350 + $0x198] sm:$0xff]
        %v479 = vld [vmem:[%s350 + $0x1a0] sm:$0xff]
        %v480 = vld [vmem:[%s350 + $0x1a8] sm:$0xff]
        %v481 = vld [vmem:[%s350 + $0x1b0] sm:$0xff]
        %v482 = vld [vmem:[%s350 + $0x1b8] sm:$0xff]
        %v483 = vld [vmem:[%s350 + $0x1c0] sm:$0xff]
        %v484 = vld [vmem:[%s350 + $0x1c8] sm:$0xff]
        %v485 = vld [vmem:[%s350 + $0x1d0] sm:$0xff]
        %v486 = vld [vmem:[%s350 + $0x1d8] sm:$0xff]
        %v487 = vld [vmem:[%s350 + $0x1e0] sm:$0xff]
        %v488 = vld [vmem:[%s350 + $0x1e8] sm:$0xff]
        %v489 = vld [vmem:[%s350 + $0x1f0] sm:$0xff]
        %v490 = vld [vmem:[%s350 + $0x1f8] sm:$0xff]
        %v491 = vld [vmem:[%s359] sm:$0x1]
        %v493 = vperm.slane %v491, 0
        %v495 = vmul.f32 %v427, %v493
        %v496 = vmul.f32 %v428, %v493
        %v497 = vmul.f32 %v429, %v493
        %v498 = vmul.f32 %v430, %v493
        %v499 = vmul.f32 %v431, %v493
        %v500 = vmul.f32 %v432, %v493
        %v501 = vmul.f32 %v433, %v493
        %v502 = vmul.f32 %v434, %v493
        %v503 = vmul.f32 %v435, %v493
        %v504 = vmul.f32 %v436, %v493
        %v505 = vmul.f32 %v437, %v493
        %v506 = vmul.f32 %v438, %v493
        %v507 = vmul.f32 %v439, %v493
        %v508 = vmul.f32 %v440, %v493
        %v509 = vmul.f32 %v441, %v493
        %v510 = vmul.f32 %v442, %v493
        %v511 = vmul.f32 %v443, %v493
        %v512 = vmul.f32 %v444, %v493
        %v513 = vmul.f32 %v445, %v493
        %v514 = vmul.f32 %v446, %v493
        %v515 = vmul.f32 %v447, %v493
        %v516 = vmul.f32 %v448, %v493
        %v517 = vmul.f32 %v449, %v493
        %v518 = vmul.f32 %v450, %v493
        %v519 = vmul.f32 %v451, %v493
        %v520 = vmul.f32 %v452, %v493
        %v521 = vmul.f32 %v453, %v493
        %v522 = vmul.f32 %v454, %v493
        %v523 = vmul.f32 %v455, %v493
        %v524 = vmul.f32 %v456, %v493
        %v525 = vmul.f32 %v457, %v493
        %v526 = vmul.f32 %v458, %v493
        %v527 = vmul.f32 %v459, %v493
        %v528 = vmul.f32 %v460, %v493
        %v529 = vmul.f32 %v461, %v493
        %v530 = vmul.f32 %v462, %v493
        %v531 = vmul.f32 %v463, %v493
        %v532 = vmul.f32 %v464, %v493
        %v533 = vmul.f32 %v465, %v493
        %v534 = vmul.f32 %v466, %v493
        %v535 = vmul.f32 %v467, %v493
        %v536 = vmul.f32 %v468, %v493
        %v537 = vmul.f32 %v469, %v493
        %v538 = vmul.f32 %v470, %v493
        %v539 = vmul.f32 %v471, %v493
        %v540 = vmul.f32 %v472, %v493
        %v541 = vmul.f32 %v473, %v493
        %v542 = vmul.f32 %v474, %v493
        %v543 = vmul.f32 %v475, %v493
        %v544 = vmul.f32 %v476, %v493
        %v545 = vmul.f32 %v477, %v493
        %v546 = vmul.f32 %v478, %v493
        %v547 = vmul.f32 %v479, %v493
        %v548 = vmul.f32 %v480, %v493
        %v549 = vmul.f32 %v481, %v493
        %v550 = vmul.f32 %v482, %v493
        %v551 = vmul.f32 %v483, %v493
        %v552 = vmul.f32 %v484, %v493
        %v553 = vmul.f32 %v485, %v493
        %v554 = vmul.f32 %v486, %v493
        %v555 = vmul.f32 %v487, %v493
        %v556 = vmul.f32 %v488, %v493
        %v557 = vmul.f32 %v489, %v493
        %v558 = vmul.f32 %v490, %v493
        %v559 = vld [vmem:[%s368] sm:$0x1]
        %v561 = vperm.slane %v559, 0
        %v563 = vadd.f32 %v495, %v561
        %v564 = vadd.f32 %v496, %v561
        %v565 = vadd.f32 %v497, %v561
        %v566 = vadd.f32 %v498, %v561
        %v567 = vadd.f32 %v499, %v561
        %v568 = vadd.f32 %v500, %v561
        %v569 = vadd.f32 %v501, %v561
        %v570 = vadd.f32 %v502, %v561
        %v571 = vadd.f32 %v503, %v561
        %v572 = vadd.f32 %v504, %v561
        %v573 = vadd.f32 %v505, %v561
        %v574 = vadd.f32 %v506, %v561
        %v575 = vadd.f32 %v507, %v561
        %v576 = vadd.f32 %v508, %v561
        %v577 = vadd.f32 %v509, %v561
        %v578 = vadd.f32 %v510, %v561
        %v579 = vadd.f32 %v511, %v561
        %v580 = vadd.f32 %v512, %v561
        %v581 = vadd.f32 %v513, %v561
        %v582 = vadd.f32 %v514, %v561
        %v583 = vadd.f32 %v515, %v561
        %v584 = vadd.f32 %v516, %v561
        %v585 = vadd.f32 %v517, %v561
        %v586 = vadd.f32 %v518, %v561
        %v587 = vadd.f32 %v519, %v561
        %v588 = vadd.f32 %v520, %v561
        %v589 = vadd.f32 %v521, %v561
        %v590 = vadd.f32 %v522, %v561
        %v591 = vadd.f32 %v523, %v561
        %v592 = vadd.f32 %v524, %v561
        %v593 = vadd.f32 %v525, %v561
        %v594 = vadd.f32 %v526, %v561
        %v595 = vadd.f32 %v527, %v561
        %v596 = vadd.f32 %v528, %v561
        %v597 = vadd.f32 %v529, %v561
        %v598 = vadd.f32 %v530, %v561
        %v599 = vadd.f32 %v531, %v561
        %v600 = vadd.f32 %v532, %v561
        %v601 = vadd.f32 %v533, %v561
        %v602 = vadd.f32 %v534, %v561
        %v603 = vadd.f32 %v535, %v561
        %v604 = vadd.f32 %v536, %v561
        %v605 = vadd.f32 %v537, %v561
        %v606 = vadd.f32 %v538, %v561
        %v607 = vadd.f32 %v539, %v561
        %v608 = vadd.f32 %v540, %v561
        %v609 = vadd.f32 %v541, %v561
        %v610 = vadd.f32 %v542, %v561
        %v611 = vadd.f32 %v543, %v561
        %v612 = vadd.f32 %v544, %v561
        %v613 = vadd.f32 %v545, %v561
        %v614 = vadd.f32 %v546, %v561
        %v615 = vadd.f32 %v547, %v561
        %v616 = vadd.f32 %v548, %v561
        %v617 = vadd.f32 %v549, %v561
        %v618 = vadd.f32 %v550, %v561
        %v619 = vadd.f32 %v551, %v561
        %v620 = vadd.f32 %v552, %v561
        %v621 = vadd.f32 %v553, %v561
        %v622 = vadd.f32 %v554, %v561
        %v623 = vadd.f32 %v555, %v561
        %v624 = vadd.f32 %v556, %v561
        %v625 = vadd.f32 %v557, %v561
        %v626 = vadd.f32 %v558, %v561
        %v627 = vpack.c.bf16 %v564, %v563
        %v628 = vpack.c.bf16 %v566, %v565
        %v629 = vpack.c.bf16 %v568, %v567
        %v630 = vpack.c.bf16 %v570, %v569
        %v631 = vpack.c.bf16 %v572, %v571
        %v632 = vpack.c.bf16 %v574, %v573
        %v633 = vpack.c.bf16 %v576, %v575
        %v634 = vpack.c.bf16 %v578, %v577
        %v635 = vpack.c.bf16 %v580, %v579
        %v636 = vpack.c.bf16 %v582, %v581
        %v637 = vpack.c.bf16 %v584, %v583
        %v638 = vpack.c.bf16 %v586, %v585
        %v639 = vpack.c.bf16 %v588, %v587
        %v640 = vpack.c.bf16 %v590, %v589
        %v641 = vpack.c.bf16 %v592, %v591
        %v642 = vpack.c.bf16 %v594, %v593
        %v643 = vpack.c.bf16 %v596, %v595
        %v644 = vpack.c.bf16 %v598, %v597
        %v645 = vpack.c.bf16 %v600, %v599
        %v646 = vpack.c.bf16 %v602, %v601
        %v647 = vpack.c.bf16 %v604, %v603
        %v648 = vpack.c.bf16 %v606, %v605
        %v649 = vpack.c.bf16 %v608, %v607
        %v650 = vpack.c.bf16 %v610, %v609
        %v651 = vpack.c.bf16 %v612, %v611
        %v652 = vpack.c.bf16 %v614, %v613
        %v653 = vpack.c.bf16 %v616, %v615
        %v654 = vpack.c.bf16 %v618, %v617
        %v655 = vpack.c.bf16 %v620, %v619
        %v656 = vpack.c.bf16 %v622, %v621
        %v657 = vpack.c.bf16 %v624, %v623
        %v658 = vpack.c.bf16 %v626, %v625
        %v659 = vld [vmem:[#allocation8] sm:$0xff]
        %v660 = vld [vmem:[#allocation8 + $0x8] sm:$0xf]
        %v661 = vld [vmem:[#allocation8 + $0xc] sm:$0xff]
        %v662 = vld [vmem:[#allocation8 + $0x14] sm:$0xf]
        %v663 = vld [vmem:[#allocation8 + $0x18] sm:$0xff]
        %v664 = vld [vmem:[#allocation8 + $0x20] sm:$0xf]
        %v665 = vld [vmem:[#allocation8 + $0x24] sm:$0xff]
        %v666 = vld [vmem:[#allocation8 + $0x2c] sm:$0xf]
        %v667 = vld [vmem:[#allocation8 + $0x30] sm:$0xff]
        %v668 = vld [vmem:[#allocation8 + $0x38] sm:$0xf]
        %v669 = vld [vmem:[#allocation8 + $0x3c] sm:$0xff]
        %v670 = vld [vmem:[#allocation8 + $0x44] sm:$0xf]
        %v671 = vld [vmem:[#allocation8 + $0x48] sm:$0xff]
        %v672 = vld [vmem:[#allocation8 + $0x50] sm:$0xf]
        %v673 = vld [vmem:[#allocation8 + $0x54] sm:$0xff]
        %v674 = vld [vmem:[#allocation8 + $0x5c] sm:$0xf]
        %v675 = vld [vmem:[#allocation8 + $0x60] sm:$0xff]
        %v676 = vld [vmem:[#allocation8 + $0x68] sm:$0xf]
        %v677 = vld [vmem:[#allocation8 + $0x6c] sm:$0xff]
        %v678 = vld [vmem:[#allocation8 + $0x74] sm:$0xf]
        %v679 = vld [vmem:[#allocation8 + $0x78] sm:$0xff]
        %v680 = vld [vmem:[#allocation8 + $0x80] sm:$0xf]
        %v681 = vld [vmem:[#allocation8 + $0x84] sm:$0xff]
        %v682 = vld [vmem:[#allocation8 + $0x8c] sm:$0xf]
        %v683 = vld [vmem:[#allocation8 + $0x90] sm:$0xff]
        %v684 = vld [vmem:[#allocation8 + $0x98] sm:$0xf]
        %v685 = vld [vmem:[#allocation8 + $0x9c] sm:$0xff]
        %v686 = vld [vmem:[#allocation8 + $0xa4] sm:$0xf]
        %v687 = vld [vmem:[#allocation8 + $0xa8] sm:$0xff]
        %v688 = vld [vmem:[#allocation8 + $0xb0] sm:$0xf]
        %v689 = vld [vmem:[#allocation8 + $0xb4] sm:$0xff]
        %v690 = vld [vmem:[#allocation8 + $0xbc] sm:$0xf]
        %v691 = vld [vmem:[%s4] sm:$0x7]
        %v693 = vperm.slane %v691, 0
        %v694 = vperm.slane %v691, 1
        %v695 = vperm.slane %v691, 2
        %v731 = vunpack.c.l.b16 %v659
        %v732 = vunpack.c.h.b16 %v659
        %v733 = vunpack.c.l.b16 %v660
        %v734 = vunpack.c.l.b16 %v661
        %v735 = vunpack.c.h.b16 %v661
        %v736 = vunpack.c.l.b16 %v662
        %v737 = vunpack.c.l.b16 %v663
        %v738 = vunpack.c.h.b16 %v663
        %v739 = vunpack.c.l.b16 %v664
        %v740 = vunpack.c.l.b16 %v665
        %v741 = vunpack.c.h.b16 %v665
        %v742 = vunpack.c.l.b16 %v666
        %v743 = vunpack.c.l.b16 %v667
        %v744 = vunpack.c.h.b16 %v667
        %v745 = vunpack.c.l.b16 %v668
        %v746 = vunpack.c.l.b16 %v669
        %v747 = vunpack.c.h.b16 %v669
        %v748 = vunpack.c.l.b16 %v670
        %v749 = vunpack.c.l.b16 %v671
        %v750 = vunpack.c.h.b16 %v671
        %v751 = vunpack.c.l.b16 %v672
        %v752 = vunpack.c.l.b16 %v673
        %v753 = vunpack.c.h.b16 %v673
        %v754 = vunpack.c.l.b16 %v674
        %v755 = vunpack.c.l.b16 %v675
        %v756 = vunpack.c.h.b16 %v675
        %v757 = vunpack.c.l.b16 %v676
        %v758 = vunpack.c.l.b16 %v677
        %v759 = vunpack.c.h.b16 %v677
        %v760 = vunpack.c.l.b16 %v678
        %v761 = vunpack.c.l.b16 %v679
        %v762 = vunpack.c.h.b16 %v679
        %v763 = vunpack.c.l.b16 %v680
        %v764 = vunpack.c.l.b16 %v681
        %v765 = vunpack.c.h.b16 %v681
        %v766 = vunpack.c.l.b16 %v682
        %v767 = vunpack.c.l.b16 %v683
        %v768 = vunpack.c.h.b16 %v683
        %v769 = vunpack.c.l.b16 %v684
        %v770 = vunpack.c.l.b16 %v685
        %v771 = vunpack.c.h.b16 %v685
        %v772 = vunpack.c.l.b16 %v686
        %v773 = vunpack.c.l.b16 %v687
        %v774 = vunpack.c.h.b16 %v687
        %v775 = vunpack.c.l.b16 %v688
        %v776 = vunpack.c.l.b16 %v689
        %v777 = vunpack.c.h.b16 %v689
        %v778 = vunpack.c.l.b16 %v690
        %v779 = vpack.c.b16 %v734, %v731
        %v780 = vpack.c.b16 %v735, %v732
        %v781 = vpack.c.b16 %v736, %v733
        %v782 = vpack.c.b16 %v740, %v737
        %v783 = vpack.c.b16 %v741, %v738
        %v784 = vpack.c.b16 %v742, %v739
        %v785 = vpack.c.b16 %v746, %v743
        %v786 = vpack.c.b16 %v747, %v744
        %v787 = vpack.c.b16 %v748, %v745
        %v788 = vpack.c.b16 %v752, %v749
        %v789 = vpack.c.b16 %v753, %v750
        %v790 = vpack.c.b16 %v754, %v751
        %v791 = vpack.c.b16 %v758, %v755
        %v792 = vpack.c.b16 %v759, %v756
        %v793 = vpack.c.b16 %v760, %v757
        %v794 = vpack.c.b16 %v764, %v761
        %v795 = vpack.c.b16 %v765, %v762
        %v796 = vpack.c.b16 %v766, %v763
        %v797 = vpack.c.b16 %v770, %v767
        %v798 = vpack.c.b16 %v771, %v768
        %v799 = vpack.c.b16 %v772, %v769
        %v800 = vpack.c.b16 %v776, %v773
        %v801 = vpack.c.b16 %v777, %v774
        %v802 = vpack.c.b16 %v778, %v775
        %827 = vmatpush.bf16.msra.mxu0 %v800
        %828 = vmatpush.bf16.msra.mxu0 %v797
        %829 = vmatpush.bf16.msra.mxu0 %v794
        %830 = vmatpush.bf16.msra.mxu0 %v791
        %831 = vmatpush.bf16.msra.mxu0 %v788
        %832 = vmatpush.bf16.msra.mxu0 %v785
        %833 = vmatpush.bf16.msra.mxu0 %v782
        %834 = vmatpush.bf16.msra.mxu0 %v779
        %835 = vmatmul.bf16.gmra.mxu0 %v627
        %v836 = vpop.f32.mrf.mxu0
        %v837 = vadd.f32 %v693, %v836
        %v838 = vpop.f32.mrf.mxu0
        %v839 = vadd.f32 %v693, %v838
        %840 = vmatmul.bf16.gmra.mxu0 %v628
        %v841 = vpop.f32.mrf.mxu0
        %v842 = vadd.f32 %v693, %v841
        %v843 = vpop.f32.mrf.mxu0
        %v844 = vadd.f32 %v693, %v843
        %845 = vmatmul.bf16.gmra.mxu0 %v629
        %v846 = vpop.f32.mrf.mxu0
        %v847 = vadd.f32 %v693, %v846
        %v848 = vpop.f32.mrf.mxu0
        %v849 = vadd.f32 %v693, %v848
        %850 = vmatmul.bf16.gmra.mxu0 %v630
        %v851 = vpop.f32.mrf.mxu0
        %v852 = vadd.f32 %v693, %v851
        %v853 = vpop.f32.mrf.mxu0
        %v854 = vadd.f32 %v693, %v853
        %855 = vmatmul.bf16.gmra.mxu0 %v631
        %v856 = vpop.f32.mrf.mxu0
        %v857 = vadd.f32 %v693, %v856
        %v858 = vpop.f32.mrf.mxu0
        %v859 = vadd.f32 %v693, %v858
        %860 = vmatmul.bf16.gmra.mxu0 %v632
        %v861 = vpop.f32.mrf.mxu0
        %v862 = vadd.f32 %v693, %v861
        %v863 = vpop.f32.mrf.mxu0
        %v864 = vadd.f32 %v693, %v863
        %865 = vmatmul.bf16.gmra.mxu0 %v633
        %v866 = vpop.f32.mrf.mxu0
        %v867 = vadd.f32 %v693, %v866
        %v868 = vpop.f32.mrf.mxu0
        %v869 = vadd.f32 %v693, %v868
        %870 = vmatmul.bf16.gmra.mxu0 %v634
        %v871 = vpop.f32.mrf.mxu0
        %v872 = vadd.f32 %v693, %v871
        %v873 = vpop.f32.mrf.mxu0
        %v874 = vadd.f32 %v693, %v873
        %875 = vmatmul.bf16.gmra.mxu0 %v635
        %v876 = vpop.f32.mrf.mxu0
        %v877 = vadd.f32 %v693, %v876
        %v878 = vpop.f32.mrf.mxu0
        %v879 = vadd.f32 %v693, %v878
        %880 = vmatmul.bf16.gmra.mxu0 %v636
        %v881 = vpop.f32.mrf.mxu0
        %v882 = vadd.f32 %v693, %v881
        %v883 = vpop.f32.mrf.mxu0
        %v884 = vadd.f32 %v693, %v883
        %885 = vmatmul.bf16.gmra.mxu0 %v637
        %v886 = vpop.f32.mrf.mxu0
        %v887 = vadd.f32 %v693, %v886
        %v888 = vpop.f32.mrf.mxu0
        %v889 = vadd.f32 %v693, %v888
        %890 = vmatmul.bf16.gmra.mxu0 %v638
        %v891 = vpop.f32.mrf.mxu0
        %v892 = vadd.f32 %v693, %v891
        %v893 = vpop.f32.mrf.mxu0
        %v894 = vadd.f32 %v693, %v893
        %895 = vmatmul.bf16.gmra.mxu0 %v639
        %v896 = vpop.f32.mrf.mxu0
        %v897 = vadd.f32 %v693, %v896
        %v898 = vpop.f32.mrf.mxu0
        %v899 = vadd.f32 %v693, %v898
        %900 = vmatmul.bf16.gmra.mxu0 %v640
        %v901 = vpop.f32.mrf.mxu0
        %v902 = vadd.f32 %v693, %v901
        %v903 = vpop.f32.mrf.mxu0
        %v904 = vadd.f32 %v693, %v903
        %905 = vmatmul.bf16.gmra.mxu0 %v641
        %v906 = vpop.f32.mrf.mxu0
        %v907 = vadd.f32 %v693, %v906
        %v908 = vpop.f32.mrf.mxu0
        %v909 = vadd.f32 %v693, %v908
        %910 = vmatmul.bf16.gmra.mxu0 %v642
        %v911 = vpop.f32.mrf.mxu0
        %v912 = vadd.f32 %v693, %v911
        %v913 = vpop.f32.mrf.mxu0
        %v914 = vadd.f32 %v693, %v913
        %915 = vmatmul.bf16.gmra.mxu0 %v643
        %v916 = vpop.f32.mrf.mxu0
        %v917 = vadd.f32 %v693, %v916
        %v918 = vpop.f32.mrf.mxu0
        %v919 = vadd.f32 %v693, %v918
        %920 = vmatmul.bf16.gmra.mxu0 %v644
        %v921 = vpop.f32.mrf.mxu0
        %v922 = vadd.f32 %v693, %v921
        %v923 = vpop.f32.mrf.mxu0
        %v924 = vadd.f32 %v693, %v923
        %925 = vmatmul.bf16.gmra.mxu0 %v645
        %v926 = vpop.f32.mrf.mxu0
        %v927 = vadd.f32 %v693, %v926
        %v928 = vpop.f32.mrf.mxu0
        %v929 = vadd.f32 %v693, %v928
        %930 = vmatmul.bf16.gmra.mxu0 %v646
        %v931 = vpop.f32.mrf.mxu0
        %v932 = vadd.f32 %v693, %v931
        %v933 = vpop.f32.mrf.mxu0
        %v934 = vadd.f32 %v693, %v933
        %935 = vmatmul.bf16.gmra.mxu0 %v647
        %v936 = vpop.f32.mrf.mxu0
        %v937 = vadd.f32 %v693, %v936
        %v938 = vpop.f32.mrf.mxu0
        %v939 = vadd.f32 %v693, %v938
        %940 = vmatmul.bf16.gmra.mxu0 %v648
        %v941 = vpop.f32.mrf.mxu0
        %v942 = vadd.f32 %v693, %v941
        %v943 = vpop.f32.mrf.mxu0
        %v944 = vadd.f32 %v693, %v943
        %945 = vmatmul.bf16.gmra.mxu0 %v649
        %v946 = vpop.f32.mrf.mxu0
        %v947 = vadd.f32 %v693, %v946
        %v948 = vpop.f32.mrf.mxu0
        %v949 = vadd.f32 %v693, %v948
        %950 = vmatmul.bf16.gmra.mxu0 %v650
        %v951 = vpop.f32.mrf.mxu0
        %v952 = vadd.f32 %v693, %v951
        %v953 = vpop.f32.mrf.mxu0
        %v954 = vadd.f32 %v693, %v953
        %955 = vmatmul.bf16.gmra.mxu0 %v651
        %v956 = vpop.f32.mrf.mxu0
        %v957 = vadd.f32 %v693, %v956
        %v958 = vpop.f32.mrf.mxu0
        %v959 = vadd.f32 %v693, %v958
        %960 = vmatmul.bf16.gmra.mxu0 %v652
        %v961 = vpop.f32.mrf.mxu0
        %v962 = vadd.f32 %v693, %v961
        %v963 = vpop.f32.mrf.mxu0
        %v964 = vadd.f32 %v693, %v963
        %965 = vmatmul.bf16.gmra.mxu0 %v653
        %v966 = vpop.f32.mrf.mxu0
        %v967 = vadd.f32 %v693, %v966
        %v968 = vpop.f32.mrf.mxu0
        %v969 = vadd.f32 %v693, %v968
        %970 = vmatmul.bf16.gmra.mxu0 %v654
        %v971 = vpop.f32.mrf.mxu0
        %v972 = vadd.f32 %v693, %v971
        %v973 = vpop.f32.mrf.mxu0
        %v974 = vadd.f32 %v693, %v973
        %975 = vmatmul.bf16.gmra.mxu0 %v655
        %v976 = vpop.f32.mrf.mxu0
        %v977 = vadd.f32 %v693, %v976
        %v978 = vpop.f32.mrf.mxu0
        %v979 = vadd.f32 %v693, %v978
        %980 = vmatmul.bf16.gmra.mxu0 %v656
        %v981 = vpop.f32.mrf.mxu0
        %v982 = vadd.f32 %v693, %v981
        %v983 = vpop.f32.mrf.mxu0
        %v984 = vadd.f32 %v693, %v983
        %985 = vmatmul.bf16.gmra.mxu0 %v657
        %v986 = vpop.f32.mrf.mxu0
        %v987 = vadd.f32 %v693, %v986
        %v988 = vpop.f32.mrf.mxu0
        %v989 = vadd.f32 %v693, %v988
        %990 = vmatmul.bf16.gmra.mxu0 %v658
        %v991 = vpop.f32.mrf.mxu0
        %v992 = vadd.f32 %v693, %v991
        %v993 = vpop.f32.mrf.mxu0
        %v994 = vadd.f32 %v693, %v993
        %995 = vdwg.mxu0
        %996 = vmatpush.bf16.msra.mxu0 %v801
        %997 = vmatpush.bf16.msra.mxu0 %v798
        %998 = vmatpush.bf16.msra.mxu0 %v795
        %999 = vmatpush.bf16.msra.mxu0 %v792
        %1000 = vmatpush.bf16.msra.mxu0 %v789
        %1001 = vmatpush.bf16.msra.mxu0 %v786
        %1002 = vmatpush.bf16.msra.mxu0 %v783
        %1003 = vmatpush.bf16.msra.mxu0 %v780
        %1004 = vmatmul.bf16.gmra.mxu0 %v627
        %v1005 = vpop.f32.mrf.mxu0
        %v1006 = vadd.f32 %v694, %v1005
        %v1007 = vpop.f32.mrf.mxu0
        %v1008 = vadd.f32 %v694, %v1007
        %1009 = vmatmul.bf16.gmra.mxu0 %v628
        %v1010 = vpop.f32.mrf.mxu0
        %v1011 = vadd.f32 %v694, %v1010
        %v1012 = vpop.f32.mrf.mxu0
        %v1013 = vadd.f32 %v694, %v1012
        %1014 = vmatmul.bf16.gmra.mxu0 %v629
        %v1015 = vpop.f32.mrf.mxu0
        %v1016 = vadd.f32 %v694, %v1015
        %v1017 = vpop.f32.mrf.mxu0
        %v1018 = vadd.f32 %v694, %v1017
        %1019 = vmatmul.bf16.gmra.mxu0 %v630
        %v1020 = vpop.f32.mrf.mxu0
        %v1021 = vadd.f32 %v694, %v1020
        %v1022 = vpop.f32.mrf.mxu0
        %v1023 = vadd.f32 %v694, %v1022
        %1024 = vmatmul.bf16.gmra.mxu0 %v631
        %v1025 = vpop.f32.mrf.mxu0
        %v1026 = vadd.f32 %v694, %v1025
        %v1027 = vpop.f32.mrf.mxu0
        %v1028 = vadd.f32 %v694, %v1027
        %1029 = vmatmul.bf16.gmra.mxu0 %v632
        %v1030 = vpop.f32.mrf.mxu0
        %v1031 = vadd.f32 %v694, %v1030
        %v1032 = vpop.f32.mrf.mxu0
        %v1033 = vadd.f32 %v694, %v1032
        %1034 = vmatmul.bf16.gmra.mxu0 %v633
        %v1035 = vpop.f32.mrf.mxu0
        %v1036 = vadd.f32 %v694, %v1035
        %v1037 = vpop.f32.mrf.mxu0
        %v1038 = vadd.f32 %v694, %v1037
        %1039 = vmatmul.bf16.gmra.mxu0 %v634
        %v1040 = vpop.f32.mrf.mxu0
        %v1041 = vadd.f32 %v694, %v1040
        %v1042 = vpop.f32.mrf.mxu0
        %v1043 = vadd.f32 %v694, %v1042
        %1044 = vmatmul.bf16.gmra.mxu0 %v635
        %v1045 = vpop.f32.mrf.mxu0
        %v1046 = vadd.f32 %v694, %v1045
        %v1047 = vpop.f32.mrf.mxu0
        %v1048 = vadd.f32 %v694, %v1047
        %1049 = vmatmul.bf16.gmra.mxu0 %v636
        %v1050 = vpop.f32.mrf.mxu0
        %v1051 = vadd.f32 %v694, %v1050
        %v1052 = vpop.f32.mrf.mxu0
        %v1053 = vadd.f32 %v694, %v1052
        %1054 = vmatmul.bf16.gmra.mxu0 %v637
        %v1055 = vpop.f32.mrf.mxu0
        %v1056 = vadd.f32 %v694, %v1055
        %v1057 = vpop.f32.mrf.mxu0
        %v1058 = vadd.f32 %v694, %v1057
        %1059 = vmatmul.bf16.gmra.mxu0 %v638
        %v1060 = vpop.f32.mrf.mxu0
        %v1061 = vadd.f32 %v694, %v1060
        %v1062 = vpop.f32.mrf.mxu0
        %v1063 = vadd.f32 %v694, %v1062
        %1064 = vmatmul.bf16.gmra.mxu0 %v639
        %v1065 = vpop.f32.mrf.mxu0
        %v1066 = vadd.f32 %v694, %v1065
        %v1067 = vpop.f32.mrf.mxu0
        %v1068 = vadd.f32 %v694, %v1067
        %1069 = vmatmul.bf16.gmra.mxu0 %v640
        %v1070 = vpop.f32.mrf.mxu0
        %v1071 = vadd.f32 %v694, %v1070
        %v1072 = vpop.f32.mrf.mxu0
        %v1073 = vadd.f32 %v694, %v1072
        %1074 = vmatmul.bf16.gmra.mxu0 %v641
        %v1075 = vpop.f32.mrf.mxu0
        %v1076 = vadd.f32 %v694, %v1075
        %v1077 = vpop.f32.mrf.mxu0
        %v1078 = vadd.f32 %v694, %v1077
        %1079 = vmatmul.bf16.gmra.mxu0 %v642
        %v1080 = vpop.f32.mrf.mxu0
        %v1081 = vadd.f32 %v694, %v1080
        %v1082 = vpop.f32.mrf.mxu0
        %v1083 = vadd.f32 %v694, %v1082
        %1084 = vmatmul.bf16.gmra.mxu0 %v643
        %v1085 = vpop.f32.mrf.mxu0
        %v1086 = vadd.f32 %v694, %v1085
        %v1087 = vpop.f32.mrf.mxu0
        %v1088 = vadd.f32 %v694, %v1087
        %1089 = vmatmul.bf16.gmra.mxu0 %v644
        %v1090 = vpop.f32.mrf.mxu0
        %v1091 = vadd.f32 %v694, %v1090
        %v1092 = vpop.f32.mrf.mxu0
        %v1093 = vadd.f32 %v694, %v1092
        %1094 = vmatmul.bf16.gmra.mxu0 %v645
        %v1095 = vpop.f32.mrf.mxu0
        %v1096 = vadd.f32 %v694, %v1095
        %v1097 = vpop.f32.mrf.mxu0
        %v1098 = vadd.f32 %v694, %v1097
        %1099 = vmatmul.bf16.gmra.mxu0 %v646
        %v1100 = vpop.f32.mrf.mxu0
        %v1101 = vadd.f32 %v694, %v1100
        %v1102 = vpop.f32.mrf.mxu0
        %v1103 = vadd.f32 %v694, %v1102
        %1104 = vmatmul.bf16.gmra.mxu0 %v647
        %v1105 = vpop.f32.mrf.mxu0
        %v1106 = vadd.f32 %v694, %v1105
        %v1107 = vpop.f32.mrf.mxu0
        %v1108 = vadd.f32 %v694, %v1107
        %1109 = vmatmul.bf16.gmra.mxu0 %v648
        %v1110 = vpop.f32.mrf.mxu0
        %v1111 = vadd.f32 %v694, %v1110
        %v1112 = vpop.f32.mrf.mxu0
        %v1113 = vadd.f32 %v694, %v1112
        %1114 = vmatmul.bf16.gmra.mxu0 %v649
        %v1115 = vpop.f32.mrf.mxu0
        %v1116 = vadd.f32 %v694, %v1115
        %v1117 = vpop.f32.mrf.mxu0
        %v1118 = vadd.f32 %v694, %v1117
        %1119 = vmatmul.bf16.gmra.mxu0 %v650
        %v1120 = vpop.f32.mrf.mxu0
        %v1121 = vadd.f32 %v694, %v1120
        %v1122 = vpop.f32.mrf.mxu0
        %v1123 = vadd.f32 %v694, %v1122
        %1124 = vmatmul.bf16.gmra.mxu0 %v651
        %v1125 = vpop.f32.mrf.mxu0
        %v1126 = vadd.f32 %v694, %v1125
        %v1127 = vpop.f32.mrf.mxu0
        %v1128 = vadd.f32 %v694, %v1127
        %1129 = vmatmul.bf16.gmra.mxu0 %v652
        %v1130 = vpop.f32.mrf.mxu0
        %v1131 = vadd.f32 %v694, %v1130
        %v1132 = vpop.f32.mrf.mxu0
        %v1133 = vadd.f32 %v694, %v1132
        %1134 = vmatmul.bf16.gmra.mxu0 %v653
        %v1135 = vpop.f32.mrf.mxu0
        %v1136 = vadd.f32 %v694, %v1135
        %v1137 = vpop.f32.mrf.mxu0
        %v1138 = vadd.f32 %v694, %v1137
        %1139 = vmatmul.bf16.gmra.mxu0 %v654
        %v1140 = vpop.f32.mrf.mxu0
        %v1141 = vadd.f32 %v694, %v1140
        %v1142 = vpop.f32.mrf.mxu0
        %v1143 = vadd.f32 %v694, %v1142
        %1144 = vmatmul.bf16.gmra.mxu0 %v655
        %v1145 = vpop.f32.mrf.mxu0
        %v1146 = vadd.f32 %v694, %v1145
        %v1147 = vpop.f32.mrf.mxu0
        %v1148 = vadd.f32 %v694, %v1147
        %1149 = vmatmul.bf16.gmra.mxu0 %v656
        %v1150 = vpop.f32.mrf.mxu0
        %v1151 = vadd.f32 %v694, %v1150
        %v1152 = vpop.f32.mrf.mxu0
        %v1153 = vadd.f32 %v694, %v1152
        %1154 = vmatmul.bf16.gmra.mxu0 %v657
        %v1155 = vpop.f32.mrf.mxu0
        %v1156 = vadd.f32 %v694, %v1155
        %v1157 = vpop.f32.mrf.mxu0
        %v1158 = vadd.f32 %v694, %v1157
        %1159 = vmatmul.bf16.gmra.mxu0 %v658
        %v1160 = vpop.f32.mrf.mxu0
        %v1161 = vadd.f32 %v694, %v1160
        %v1162 = vpop.f32.mrf.mxu0
        %v1163 = vadd.f32 %v694, %v1162
        %1164 = vdwg.mxu0
        %1165 = vmatpush.bf16.msra.mxu0 %v802
        %1166 = vmatpush.bf16.msra.mxu0 %v799
        %1167 = vmatpush.bf16.msra.mxu0 %v796
        %1168 = vmatpush.bf16.msra.mxu0 %v793
        %1169 = vmatpush.bf16.msra.mxu0 %v790
        %1170 = vmatpush.bf16.msra.mxu0 %v787
        %1171 = vmatpush.bf16.msra.mxu0 %v784
        %1172 = vmatpush.bf16.msra.mxu0 %v781
        %1173 = vmatmul.bf16.gmra.mxu0 %v627
        %v1174 = vpop.f32.mrf.mxu0
        %v1175 = vadd.f32 %v695, %v1174
        %v1176 = vpop.f32.mrf.mxu0
        %v1177 = vadd.f32 %v695, %v1176
        %1178 = vmatmul.bf16.gmra.mxu0 %v628
        %v1179 = vpop.f32.mrf.mxu0
        %v1180 = vadd.f32 %v695, %v1179
        %v1181 = vpop.f32.mrf.mxu0
        %v1182 = vadd.f32 %v695, %v1181
        %1183 = vmatmul.bf16.gmra.mxu0 %v629
        %v1184 = vpop.f32.mrf.mxu0
        %v1185 = vadd.f32 %v695, %v1184
        %v1186 = vpop.f32.mrf.mxu0
        %v1187 = vadd.f32 %v695, %v1186
        %1188 = vmatmul.bf16.gmra.mxu0 %v630
        %v1189 = vpop.f32.mrf.mxu0
        %v1190 = vadd.f32 %v695, %v1189
        %v1191 = vpop.f32.mrf.mxu0
        %v1192 = vadd.f32 %v695, %v1191
        %1193 = vmatmul.bf16.gmra.mxu0 %v631
        %v1194 = vpop.f32.mrf.mxu0
        %v1195 = vadd.f32 %v695, %v1194
        %v1196 = vpop.f32.mrf.mxu0
        %v1197 = vadd.f32 %v695, %v1196
        %1198 = vmatmul.bf16.gmra.mxu0 %v632
        %v1199 = vpop.f32.mrf.mxu0
        %v1200 = vadd.f32 %v695, %v1199
        %v1201 = vpop.f32.mrf.mxu0
        %v1202 = vadd.f32 %v695, %v1201
        %1203 = vmatmul.bf16.gmra.mxu0 %v633
        %v1204 = vpop.f32.mrf.mxu0
        %v1205 = vadd.f32 %v695, %v1204
        %v1206 = vpop.f32.mrf.mxu0
        %v1207 = vadd.f32 %v695, %v1206
        %1208 = vmatmul.bf16.gmra.mxu0 %v634
        %v1209 = vpop.f32.mrf.mxu0
        %v1210 = vadd.f32 %v695, %v1209
        %v1211 = vpop.f32.mrf.mxu0
        %v1212 = vadd.f32 %v695, %v1211
        %1213 = vmatmul.bf16.gmra.mxu0 %v635
        %v1214 = vpop.f32.mrf.mxu0
        %v1215 = vadd.f32 %v695, %v1214
        %v1216 = vpop.f32.mrf.mxu0
        %v1217 = vadd.f32 %v695, %v1216
        %1218 = vmatmul.bf16.gmra.mxu0 %v636
        %v1219 = vpop.f32.mrf.mxu0
        %v1220 = vadd.f32 %v695, %v1219
        %v1221 = vpop.f32.mrf.mxu0
        %v1222 = vadd.f32 %v695, %v1221
        %1223 = vmatmul.bf16.gmra.mxu0 %v637
        %v1224 = vpop.f32.mrf.mxu0
        %v1225 = vadd.f32 %v695, %v1224
        %v1226 = vpop.f32.mrf.mxu0
        %v1227 = vadd.f32 %v695, %v1226
        %1228 = vmatmul.bf16.gmra.mxu0 %v638
        %v1229 = vpop.f32.mrf.mxu0
        %v1230 = vadd.f32 %v695, %v1229
        %v1231 = vpop.f32.mrf.mxu0
        %v1232 = vadd.f32 %v695, %v1231
        %1233 = vmatmul.bf16.gmra.mxu0 %v639
        %v1234 = vpop.f32.mrf.mxu0
        %v1235 = vadd.f32 %v695, %v1234
        %v1236 = vpop.f32.mrf.mxu0
        %v1237 = vadd.f32 %v695, %v1236
        %1238 = vmatmul.bf16.gmra.mxu0 %v640
        %v1239 = vpop.f32.mrf.mxu0
        %v1240 = vadd.f32 %v695, %v1239
        %v1241 = vpop.f32.mrf.mxu0
        %v1242 = vadd.f32 %v695, %v1241
        %1243 = vmatmul.bf16.gmra.mxu0 %v641
        %v1244 = vpop.f32.mrf.mxu0
        %v1245 = vadd.f32 %v695, %v1244
        %v1246 = vpop.f32.mrf.mxu0
        %v1247 = vadd.f32 %v695, %v1246
        %1248 = vmatmul.bf16.gmra.mxu0 %v642
        %v1249 = vpop.f32.mrf.mxu0
        %v1250 = vadd.f32 %v695, %v1249
        %v1251 = vpop.f32.mrf.mxu0
        %v1252 = vadd.f32 %v695, %v1251
        %1253 = vmatmul.bf16.gmra.mxu0 %v643
        %v1254 = vpop.f32.mrf.mxu0
        %v1255 = vadd.f32 %v695, %v1254
        %v1256 = vpop.f32.mrf.mxu0
        %v1257 = vadd.f32 %v695, %v1256
        %1258 = vmatmul.bf16.gmra.mxu0 %v644
        %v1259 = vpop.f32.mrf.mxu0
        %v1260 = vadd.f32 %v695, %v1259
        %v1261 = vpop.f32.mrf.mxu0
        %v1262 = vadd.f32 %v695, %v1261
        %1263 = vmatmul.bf16.gmra.mxu0 %v645
        %v1264 = vpop.f32.mrf.mxu0
        %v1265 = vadd.f32 %v695, %v1264
        %v1266 = vpop.f32.mrf.mxu0
        %v1267 = vadd.f32 %v695, %v1266
        %1268 = vmatmul.bf16.gmra.mxu0 %v646
        %v1269 = vpop.f32.mrf.mxu0
        %v1270 = vadd.f32 %v695, %v1269
        %v1271 = vpop.f32.mrf.mxu0
        %v1272 = vadd.f32 %v695, %v1271
        %1273 = vmatmul.bf16.gmra.mxu0 %v647
        %v1274 = vpop.f32.mrf.mxu0
        %v1275 = vadd.f32 %v695, %v1274
        %v1276 = vpop.f32.mrf.mxu0
        %v1277 = vadd.f32 %v695, %v1276
        %1278 = vmatmul.bf16.gmra.mxu0 %v648
        %v1279 = vpop.f32.mrf.mxu0
        %v1280 = vadd.f32 %v695, %v1279
        %v1281 = vpop.f32.mrf.mxu0
        %v1282 = vadd.f32 %v695, %v1281
        %1283 = vmatmul.bf16.gmra.mxu0 %v649
        %v1284 = vpop.f32.mrf.mxu0
        %v1285 = vadd.f32 %v695, %v1284
        %v1286 = vpop.f32.mrf.mxu0
        %v1287 = vadd.f32 %v695, %v1286
        %1288 = vmatmul.bf16.gmra.mxu0 %v650
        %v1289 = vpop.f32.mrf.mxu0
        %v1290 = vadd.f32 %v695, %v1289
        %v1291 = vpop.f32.mrf.mxu0
        %v1292 = vadd.f32 %v695, %v1291
        %1293 = vmatmul.bf16.gmra.mxu0 %v651
        %v1294 = vpop.f32.mrf.mxu0
        %v1295 = vadd.f32 %v695, %v1294
        %v1296 = vpop.f32.mrf.mxu0
        %v1297 = vadd.f32 %v695, %v1296
        %1298 = vmatmul.bf16.gmra.mxu0 %v652
        %v1299 = vpop.f32.mrf.mxu0
        %v1300 = vadd.f32 %v695, %v1299
        %v1301 = vpop.f32.mrf.mxu0
        %v1302 = vadd.f32 %v695, %v1301
        %1303 = vmatmul.bf16.gmra.mxu0 %v653
        %v1304 = vpop.f32.mrf.mxu0
        %v1305 = vadd.f32 %v695, %v1304
        %v1306 = vpop.f32.mrf.mxu0
        %v1307 = vadd.f32 %v695, %v1306
        %1308 = vmatmul.bf16.gmra.mxu0 %v654
        %v1309 = vpop.f32.mrf.mxu0
        %v1310 = vadd.f32 %v695, %v1309
        %v1311 = vpop.f32.mrf.mxu0
        %v1312 = vadd.f32 %v695, %v1311
        %1313 = vmatmul.bf16.gmra.mxu0 %v655
        %v1314 = vpop.f32.mrf.mxu0
        %v1315 = vadd.f32 %v695, %v1314
        %v1316 = vpop.f32.mrf.mxu0
        %v1317 = vadd.f32 %v695, %v1316
        %1318 = vmatmul.bf16.gmra.mxu0 %v656
        %v1319 = vpop.f32.mrf.mxu0
        %v1320 = vadd.f32 %v695, %v1319
        %v1321 = vpop.f32.mrf.mxu0
        %v1322 = vadd.f32 %v695, %v1321
        %1323 = vmatmul.bf16.gmra.mxu0 %v657
        %v1324 = vpop.f32.mrf.mxu0
        %v1325 = vadd.f32 %v695, %v1324
        %v1326 = vpop.f32.mrf.mxu0
        %v1327 = vadd.f32 %v695, %v1326
        %1328 = vmatmul.bf16.gmra.mxu0 %v658
        %v1329 = vpop.f32.mrf.mxu0
        %v1330 = vadd.f32 %v695, %v1329
        %v1331 = vpop.f32.mrf.mxu0
        %v1332 = vadd.f32 %v695, %v1331
        %1333 = vdwg.mxu0
        %v1334 = vpack.c.bf16 %v1006, %v837
        %v1335 = vpack.c.bf16 %v1175, %v1175
        %v1336 = vpack.c.bf16 %v1008, %v839
        %v1337 = vpack.c.bf16 %v1177, %v1177
        %v1338 = vpack.c.bf16 %v1011, %v842
        %v1339 = vpack.c.bf16 %v1180, %v1180
        %v1340 = vpack.c.bf16 %v1013, %v844
        %v1341 = vpack.c.bf16 %v1182, %v1182
        %v1342 = vpack.c.bf16 %v1016, %v847
        %v1343 = vpack.c.bf16 %v1185, %v1185
        %v1344 = vpack.c.bf16 %v1018, %v849
        %v1345 = vpack.c.bf16 %v1187, %v1187
        %v1346 = vpack.c.bf16 %v1021, %v852
        %v1347 = vpack.c.bf16 %v1190, %v1190
        %v1348 = vpack.c.bf16 %v1023, %v854
        %v1349 = vpack.c.bf16 %v1192, %v1192
        %v1350 = vpack.c.bf16 %v1026, %v857
        %v1351 = vpack.c.bf16 %v1195, %v1195
        %v1352 = vpack.c.bf16 %v1028, %v859
        %v1353 = vpack.c.bf16 %v1197, %v1197
        %v1354 = vpack.c.bf16 %v1031, %v862
        %v1355 = vpack.c.bf16 %v1200, %v1200
        %v1356 = vpack.c.bf16 %v1033, %v864
        %v1357 = vpack.c.bf16 %v1202, %v1202
        %v1358 = vpack.c.bf16 %v1036, %v867
        %v1359 = vpack.c.bf16 %v1205, %v1205
        %v1360 = vpack.c.bf16 %v1038, %v869
        %v1361 = vpack.c.bf16 %v1207, %v1207
        %v1362 = vpack.c.bf16 %v1041, %v872
        %v1363 = vpack.c.bf16 %v1210, %v1210
        %v1364 = vpack.c.bf16 %v1043, %v874
        %v1365 = vpack.c.bf16 %v1212, %v1212
        %v1366 = vpack.c.bf16 %v1046, %v877
        %v1367 = vpack.c.bf16 %v1215, %v1215
        %v1368 = vpack.c.bf16 %v1048, %v879
        %v1369 = vpack.c.bf16 %v1217, %v1217
        %v1370 = vpack.c.bf16 %v1051, %v882
        %v1371 = vpack.c.bf16 %v1220, %v1220
        %v1372 = vpack.c.bf16 %v1053, %v884
        %v1373 = vpack.c.bf16 %v1222, %v1222
        %v1374 = vpack.c.bf16 %v1056, %v887
        %v1375 = vpack.c.bf16 %v1225, %v1225
        %v1376 = vpack.c.bf16 %v1058, %v889
        %v1377 = vpack.c.bf16 %v1227, %v1227
        %v1378 = vpack.c.bf16 %v1061, %v892
        %v1379 = vpack.c.bf16 %v1230, %v1230
        %v1380 = vpack.c.bf16 %v1063, %v894
        %v1381 = vpack.c.bf16 %v1232, %v1232
        %v1382 = vpack.c.bf16 %v1066, %v897
        %v1383 = vpack.c.bf16 %v1235, %v1235
        %v1384 = vpack.c.bf16 %v1068, %v899
        %v1385 = vpack.c.bf16 %v1237, %v1237
        %v1386 = vpack.c.bf16 %v1071, %v902
        %v1387 = vpack.c.bf16 %v1240, %v1240
        %v1388 = vpack.c.bf16 %v1073, %v904
        %v1389 = vpack.c.bf16 %v1242, %v1242
        %v1390 = vpack.c.bf16 %v1076, %v907
        %v1391 = vpack.c.bf16 %v1245, %v1245
        %v1392 = vpack.c.bf16 %v1078, %v909
        %v1393 = vpack.c.bf16 %v1247, %v1247
        %v1394 = vpack.c.bf16 %v1081, %v912
        %v1395 = vpack.c.bf16 %v1250, %v1250
        %v1396 = vpack.c.bf16 %v1083, %v914
        %v1397 = vpack.c.bf16 %v1252, %v1252
        %v1398 = vpack.c.bf16 %v1086, %v917
        %v1399 = vpack.c.bf16 %v1255, %v1255
        %v1400 = vpack.c.bf16 %v1088, %v919
        %v1401 = vpack.c.bf16 %v1257, %v1257
        %v1402 = vpack.c.bf16 %v1091, %v922
        %v1403 = vpack.c.bf16 %v1260, %v1260
        %v1404 = vpack.c.bf16 %v1093, %v924
        %v1405 = vpack.c.bf16 %v1262, %v1262
        %v1406 = vpack.c.bf16 %v1096, %v927
        %v1407 = vpack.c.bf16 %v1265, %v1265
        %v1408 = vpack.c.bf16 %v1098, %v929
        %v1409 = vpack.c.bf16 %v1267, %v1267
        %v1410 = vpack.c.bf16 %v1101, %v932
        %v1411 = vpack.c.bf16 %v1270, %v1270
        %v1412 = vpack.c.bf16 %v1103, %v934
        %v1413 = vpack.c.bf16 %v1272, %v1272
        %v1414 = vpack.c.bf16 %v1106, %v937
        %v1415 = vpack.c.bf16 %v1275, %v1275
        %v1416 = vpack.c.bf16 %v1108, %v939
        %v1417 = vpack.c.bf16 %v1277, %v1277
        %v1418 = vpack.c.bf16 %v1111, %v942
        %v1419 = vpack.c.bf16 %v1280, %v1280
        %v1420 = vpack.c.bf16 %v1113, %v944
        %v1421 = vpack.c.bf16 %v1282, %v1282
        %v1422 = vpack.c.bf16 %v1116, %v947
        %v1423 = vpack.c.bf16 %v1285, %v1285
        %v1424 = vpack.c.bf16 %v1118, %v949
        %v1425 = vpack.c.bf16 %v1287, %v1287
        %v1426 = vpack.c.bf16 %v1121, %v952
        %v1427 = vpack.c.bf16 %v1290, %v1290
        %v1428 = vpack.c.bf16 %v1123, %v954
        %v1429 = vpack.c.bf16 %v1292, %v1292
        %v1430 = vpack.c.bf16 %v1126, %v957
        %v1431 = vpack.c.bf16 %v1295, %v1295
        %v1432 = vpack.c.bf16 %v1128, %v959
        %v1433 = vpack.c.bf16 %v1297, %v1297
        %v1434 = vpack.c.bf16 %v1131, %v962
        %v1435 = vpack.c.bf16 %v1300, %v1300
        %v1436 = vpack.c.bf16 %v1133, %v964
        %v1437 = vpack.c.bf16 %v1302, %v1302
        %v1438 = vpack.c.bf16 %v1136, %v967
        %v1439 = vpack.c.bf16 %v1305, %v1305
        %v1440 = vpack.c.bf16 %v1138, %v969
        %v1441 = vpack.c.bf16 %v1307, %v1307
        %v1442 = vpack.c.bf16 %v1141, %v972
        %v1443 = vpack.c.bf16 %v1310, %v1310
        %v1444 = vpack.c.bf16 %v1143, %v974
        %v1445 = vpack.c.bf16 %v1312, %v1312
        %v1446 = vpack.c.bf16 %v1146, %v977
        %v1447 = vpack.c.bf16 %v1315, %v1315
        %v1448 = vpack.c.bf16 %v1148, %v979
        %v1449 = vpack.c.bf16 %v1317, %v1317
        %v1450 = vpack.c.bf16 %v1151, %v982
        %v1451 = vpack.c.bf16 %v1320, %v1320
        %v1452 = vpack.c.bf16 %v1153, %v984
        %v1453 = vpack.c.bf16 %v1322, %v1322
        %v1454 = vpack.c.bf16 %v1156, %v987
        %v1455 = vpack.c.bf16 %v1325, %v1325
        %v1456 = vpack.c.bf16 %v1158, %v989
        %v1457 = vpack.c.bf16 %v1327, %v1327
        %v1458 = vpack.c.bf16 %v1161, %v992
        %v1459 = vpack.c.bf16 %v1330, %v1330
        %v1460 = vpack.c.bf16 %v1163, %v994
        %v1461 = vpack.c.bf16 %v1332, %v1332
        %1462 = vst [vmem:[%s408] sm:$0xf] %v1334
        %1463 = vst [vmem:[%s408 + $0x4] sm:$0xf] %v1336
        %1464 = vst [vmem:[%s408 + $0x8] sm:$0xf] %v1338
        %1465 = vst [vmem:[%s408 + $0xc] sm:$0xf] %v1340
        %1466 = vst [vmem:[%s408 + $0x10] sm:$0xf] %v1342
        %1467 = vst [vmem:[%s408 + $0x14] sm:$0xf] %v1344
        %1468 = vst [vmem:[%s408 + $0x18] sm:$0xf] %v1346
        %1469 = vst [vmem:[%s408 + $0x1c] sm:$0xf] %v1348
        %1470 = vst [vmem:[%s408 + $0x20] sm:$0xf] %v1350
        %1471 = vst [vmem:[%s408 + $0x24] sm:$0xf] %v1352
        %1472 = vst [vmem:[%s408 + $0x28] sm:$0xf] %v1354
        %1473 = vst [vmem:[%s408 + $0x2c] sm:$0xf] %v1356
        %1474 = vst [vmem:[%s408 + $0x30] sm:$0xf] %v1358
        %1475 = vst [vmem:[%s408 + $0x34] sm:$0xf] %v1360
        %1476 = vst [vmem:[%s408 + $0x38] sm:$0xf] %v1362
        %1477 = vst [vmem:[%s408 + $0x3c] sm:$0xf] %v1364
        %1478 = vst [vmem:[%s408 + $0x40] sm:$0xf] %v1366
        %1479 = vst [vmem:[%s408 + $0x44] sm:$0xf] %v1368
        %1480 = vst [vmem:[%s408 + $0x48] sm:$0xf] %v1370
        %1481 = vst [vmem:[%s408 + $0x4c] sm:$0xf] %v1372
        %1482 = vst [vmem:[%s408 + $0x50] sm:$0xf] %v1374
        %1483 = vst [vmem:[%s408 + $0x54] sm:$0xf] %v1376
        %1484 = vst [vmem:[%s408 + $0x58] sm:$0xf] %v1378
        %1485 = vst [vmem:[%s408 + $0x5c] sm:$0xf] %v1380
        %1486 = vst [vmem:[%s408 + $0x60] sm:$0xf] %v1382
        %1487 = vst [vmem:[%s408 + $0x64] sm:$0xf] %v1384
        %1488 = vst [vmem:[%s408 + $0x68] sm:$0xf] %v1386
        %1489 = vst [vmem:[%s408 + $0x6c] sm:$0xf] %v1388
        %1490 = vst [vmem:[%s408 + $0x70] sm:$0xf] %v1390
        %1491 = vst [vmem:[%s408 + $0x74] sm:$0xf] %v1392
        %1492 = vst [vmem:[%s408 + $0x78] sm:$0xf] %v1394
        %1493 = vst [vmem:[%s408 + $0x7c] sm:$0xf] %v1396
        %1494 = vst [vmem:[%s408 + $0x80] sm:$0xf] %v1398
        %1495 = vst [vmem:[%s408 + $0x84] sm:$0xf] %v1400
        %1496 = vst [vmem:[%s408 + $0x88] sm:$0xf] %v1402
        %1497 = vst [vmem:[%s408 + $0x8c] sm:$0xf] %v1404
        %1498 = vst [vmem:[%s408 + $0x90] sm:$0xf] %v1406
        %1499 = vst [vmem:[%s408 + $0x94] sm:$0xf] %v1408
        %1500 = vst [vmem:[%s408 + $0x98] sm:$0xf] %v1410
        %1501 = vst [vmem:[%s408 + $0x9c] sm:$0xf] %v1412
        %1502 = vst [vmem:[%s408 + $0xa0] sm:$0xf] %v1414
        %1503 = vst [vmem:[%s408 + $0xa4] sm:$0xf] %v1416
        %1504 = vst [vmem:[%s408 + $0xa8] sm:$0xf] %v1418
        %1505 = vst [vmem:[%s408 + $0xac] sm:$0xf] %v1420
        %1506 = vst [vmem:[%s408 + $0xb0] sm:$0xf] %v1422
        %1507 = vst [vmem:[%s408 + $0xb4] sm:$0xf] %v1424
        %1508 = vst [vmem:[%s408 + $0xb8] sm:$0xf] %v1426
        %1509 = vst [vmem:[%s408 + $0xbc] sm:$0xf] %v1428
        %1510 = vst [vmem:[%s408 + $0xc0] sm:$0xf] %v1430
        %1511 = vst [vmem:[%s408 + $0xc4] sm:$0xf] %v1432
        %1512 = vst [vmem:[%s408 + $0xc8] sm:$0xf] %v1434
        %1513 = vst [vmem:[%s408 + $0xcc] sm:$0xf] %v1436
        %1514 = vst [vmem:[%s408 + $0xd0] sm:$0xf] %v1438
        %1515 = vst [vmem:[%s408 + $0xd4] sm:$0xf] %v1440
        %1516 = vst [vmem:[%s408 + $0xd8] sm:$0xf] %v1442
        %1517 = vst [vmem:[%s408 + $0xdc] sm:$0xf] %v1444
        %1518 = vst [vmem:[%s408 + $0xe0] sm:$0xf] %v1446
        %1519 = vst [vmem:[%s408 + $0xe4] sm:$0xf] %v1448
        %1520 = vst [vmem:[%s408 + $0xe8] sm:$0xf] %v1450
        %1521 = vst [vmem:[%s408 + $0xec] sm:$0xf] %v1452
        %1522 = vst [vmem:[%s408 + $0xf0] sm:$0xf] %v1454
        %1523 = vst [vmem:[%s408 + $0xf4] sm:$0xf] %v1456
        %1524 = vst [vmem:[%s408 + $0xf8] sm:$0xf] %v1458
        %1525 = vst [vmem:[%s408 + $0xfc] sm:$0xf] %v1460
        %v1590 = vrot.slane %v1334, 4
        %v1591 = vrot.slane %v1336, 4
        %v1592 = vrot.slane %v1338, 4
        %v1593 = vrot.slane %v1340, 4
        %v1594 = vrot.slane %v1342, 4
        %v1595 = vrot.slane %v1344, 4
        %v1596 = vrot.slane %v1346, 4
        %v1597 = vrot.slane %v1348, 4
        %v1598 = vrot.slane %v1350, 4
        %v1599 = vrot.slane %v1352, 4
        %v1600 = vrot.slane %v1354, 4
        %v1601 = vrot.slane %v1356, 4
        %v1602 = vrot.slane %v1358, 4
        %v1603 = vrot.slane %v1360, 4
        %v1604 = vrot.slane %v1362, 4
        %v1605 = vrot.slane %v1364, 4
        %v1606 = vrot.slane %v1366, 4
        %v1607 = vrot.slane %v1368, 4
        %v1608 = vrot.slane %v1370, 4
        %v1609 = vrot.slane %v1372, 4
        %v1610 = vrot.slane %v1374, 4
        %v1611 = vrot.slane %v1376, 4
        %v1612 = vrot.slane %v1378, 4
        %v1613 = vrot.slane %v1380, 4
        %v1614 = vrot.slane %v1382, 4
        %v1615 = vrot.slane %v1384, 4
        %v1616 = vrot.slane %v1386, 4
        %v1617 = vrot.slane %v1388, 4
        %v1618 = vrot.slane %v1390, 4
        %v1619 = vrot.slane %v1392, 4
        %v1620 = vrot.slane %v1394, 4
        %v1621 = vrot.slane %v1396, 4
        %v1622 = vrot.slane %v1398, 4
        %v1623 = vrot.slane %v1400, 4
        %v1624 = vrot.slane %v1402, 4
        %v1625 = vrot.slane %v1404, 4
        %v1626 = vrot.slane %v1406, 4
        %v1627 = vrot.slane %v1408, 4
        %v1628 = vrot.slane %v1410, 4
        %v1629 = vrot.slane %v1412, 4
        %v1630 = vrot.slane %v1414, 4
        %v1631 = vrot.slane %v1416, 4
        %v1632 = vrot.slane %v1418, 4
        %v1633 = vrot.slane %v1420, 4
        %v1634 = vrot.slane %v1422, 4
        %v1635 = vrot.slane %v1424, 4
        %v1636 = vrot.slane %v1426, 4
        %v1637 = vrot.slane %v1428, 4
        %v1638 = vrot.slane %v1430, 4
        %v1639 = vrot.slane %v1432, 4
        %v1640 = vrot.slane %v1434, 4
        %v1641 = vrot.slane %v1436, 4
        %v1642 = vrot.slane %v1438, 4
        %v1643 = vrot.slane %v1440, 4
        %v1644 = vrot.slane %v1442, 4
        %v1645 = vrot.slane %v1444, 4
        %v1646 = vrot.slane %v1446, 4
        %v1647 = vrot.slane %v1448, 4
        %v1648 = vrot.slane %v1450, 4
        %v1649 = vrot.slane %v1452, 4
        %v1650 = vrot.slane %v1454, 4
        %v1651 = vrot.slane %v1456, 4
        %v1652 = vrot.slane %v1458, 4
        %v1653 = vrot.slane %v1460, 4
        %1718 = vst [vmem:[%s415] sm:$0xf] %v1590
        %1719 = vst [vmem:[%s415 + $0x4] sm:$0xf] %v1591
        %1720 = vst [vmem:[%s415 + $0x8] sm:$0xf] %v1592
        %1721 = vst [vmem:[%s415 + $0xc] sm:$0xf] %v1593
        %1722 = vst [vmem:[%s415 + $0x10] sm:$0xf] %v1594
        %1723 = vst [vmem:[%s415 + $0x14] sm:$0xf] %v1595
        %1724 = vst [vmem:[%s415 + $0x18] sm:$0xf] %v1596
        %1725 = vst [vmem:[%s415 + $0x1c] sm:$0xf] %v1597
        %1726 = vst [vmem:[%s415 + $0x20] sm:$0xf] %v1598
        %1727 = vst [vmem:[%s415 + $0x24] sm:$0xf] %v1599
        %1728 = vst [vmem:[%s415 + $0x28] sm:$0xf] %v1600
        %1729 = vst [vmem:[%s415 + $0x2c] sm:$0xf] %v1601
        %1730 = vst [vmem:[%s415 + $0x30] sm:$0xf] %v1602
        %1731 = vst [vmem:[%s415 + $0x34] sm:$0xf] %v1603
        %1732 = vst [vmem:[%s415 + $0x38] sm:$0xf] %v1604
        %1733 = vst [vmem:[%s415 + $0x3c] sm:$0xf] %v1605
        %1734 = vst [vmem:[%s415 + $0x40] sm:$0xf] %v1606
        %1735 = vst [vmem:[%s415 + $0x44] sm:$0xf] %v1607
        %1736 = vst [vmem:[%s415 + $0x48] sm:$0xf] %v1608
        %1737 = vst [vmem:[%s415 + $0x4c] sm:$0xf] %v1609
        %1738 = vst [vmem:[%s415 + $0x50] sm:$0xf] %v1610
        %1739 = vst [vmem:[%s415 + $0x54] sm:$0xf] %v1611
        %1740 = vst [vmem:[%s415 + $0x58] sm:$0xf] %v1612
        %1741 = vst [vmem:[%s415 + $0x5c] sm:$0xf] %v1613
        %1742 = vst [vmem:[%s415 + $0x60] sm:$0xf] %v1614
        %1743 = vst [vmem:[%s415 + $0x64] sm:$0xf] %v1615
        %1744 = vst [vmem:[%s415 + $0x68] sm:$0xf] %v1616
        %1745 = vst [vmem:[%s415 + $0x6c] sm:$0xf] %v1617
        %1746 = vst [vmem:[%s415 + $0x70] sm:$0xf] %v1618
        %1747 = vst [vmem:[%s415 + $0x74] sm:$0xf] %v1619
        %1748 = vst [vmem:[%s415 + $0x78] sm:$0xf] %v1620
        %1749 = vst [vmem:[%s415 + $0x7c] sm:$0xf] %v1621
        %1750 = vst [vmem:[%s415 + $0x80] sm:$0xf] %v1622
        %1751 = vst [vmem:[%s415 + $0x84] sm:$0xf] %v1623
        %1752 = vst [vmem:[%s415 + $0x88] sm:$0xf] %v1624
        %1753 = vst [vmem:[%s415 + $0x8c] sm:$0xf] %v1625
        %1754 = vst [vmem:[%s415 + $0x90] sm:$0xf] %v1626
        %1755 = vst [vmem:[%s415 + $0x94] sm:$0xf] %v1627
        %1756 = vst [vmem:[%s415 + $0x98] sm:$0xf] %v1628
        %1757 = vst [vmem:[%s415 + $0x9c] sm:$0xf] %v1629
        %1758 = vst [vmem:[%s415 + $0xa0] sm:$0xf] %v1630
        %1759 = vst [vmem:[%s415 + $0xa4] sm:$0xf] %v1631
        %1760 = vst [vmem:[%s415 + $0xa8] sm:$0xf] %v1632
        %1761 = vst [vmem:[%s415 + $0xac] sm:$0xf] %v1633
        %1762 = vst [vmem:[%s415 + $0xb0] sm:$0xf] %v1634
        %1763 = vst [vmem:[%s415 + $0xb4] sm:$0xf] %v1635
        %1764 = vst [vmem:[%s415 + $0xb8] sm:$0xf] %v1636
        %1765 = vst [vmem:[%s415 + $0xbc] sm:$0xf] %v1637
        %1766 = vst [vmem:[%s415 + $0xc0] sm:$0xf] %v1638
        %1767 = vst [vmem:[%s415 + $0xc4] sm:$0xf] %v1639
        %1768 = vst [vmem:[%s415 + $0xc8] sm:$0xf] %v1640
        %1769 = vst [vmem:[%s415 + $0xcc] sm:$0xf] %v1641
        %1770 = vst [vmem:[%s415 + $0xd0] sm:$0xf] %v1642
        %1771 = vst [vmem:[%s415 + $0xd4] sm:$0xf] %v1643
        %1772 = vst [vmem:[%s415 + $0xd8] sm:$0xf] %v1644
        %1773 = vst [vmem:[%s415 + $0xdc] sm:$0xf] %v1645
        %1774 = vst [vmem:[%s415 + $0xe0] sm:$0xf] %v1646
        %1775 = vst [vmem:[%s415 + $0xe4] sm:$0xf] %v1647
        %1776 = vst [vmem:[%s415 + $0xe8] sm:$0xf] %v1648
        %1777 = vst [vmem:[%s415 + $0xec] sm:$0xf] %v1649
        %1778 = vst [vmem:[%s415 + $0xf0] sm:$0xf] %v1650
        %1779 = vst [vmem:[%s415 + $0xf4] sm:$0xf] %v1651
        %1780 = vst [vmem:[%s415 + $0xf8] sm:$0xf] %v1652
        %1781 = vst [vmem:[%s415 + $0xfc] sm:$0xf] %v1653
        %1782 = vst [vmem:[%s422] sm:$0xf] %v1335
        %1783 = vst [vmem:[%s422 + $0x4] sm:$0xf] %v1337
        %1784 = vst [vmem:[%s422 + $0x8] sm:$0xf] %v1339
        %1785 = vst [vmem:[%s422 + $0xc] sm:$0xf] %v1341
        %1786 = vst [vmem:[%s422 + $0x10] sm:$0xf] %v1343
        %1787 = vst [vmem:[%s422 + $0x14] sm:$0xf] %v1345
        %1788 = vst [vmem:[%s422 + $0x18] sm:$0xf] %v1347
        %1789 = vst [vmem:[%s422 + $0x1c] sm:$0xf] %v1349
        %1790 = vst [vmem:[%s422 + $0x20] sm:$0xf] %v1351
        %1791 = vst [vmem:[%s422 + $0x24] sm:$0xf] %v1353
        %1792 = vst [vmem:[%s422 + $0x28] sm:$0xf] %v1355
        %1793 = vst [vmem:[%s422 + $0x2c] sm:$0xf] %v1357
        %1794 = vst [vmem:[%s422 + $0x30] sm:$0xf] %v1359
        %1795 = vst [vmem:[%s422 + $0x34] sm:$0xf] %v1361
        %1796 = vst [vmem:[%s422 + $0x38] sm:$0xf] %v1363
        %1797 = vst [vmem:[%s422 + $0x3c] sm:$0xf] %v1365
        %1798 = vst [vmem:[%s422 + $0x40] sm:$0xf] %v1367
        %1799 = vst [vmem:[%s422 + $0x44] sm:$0xf] %v1369
        %1800 = vst [vmem:[%s422 + $0x48] sm:$0xf] %v1371
        %1801 = vst [vmem:[%s422 + $0x4c] sm:$0xf] %v1373
        %1802 = vst [vmem:[%s422 + $0x50] sm:$0xf] %v1375
        %1803 = vst [vmem:[%s422 + $0x54] sm:$0xf] %v1377
        %1804 = vst [vmem:[%s422 + $0x58] sm:$0xf] %v1379
        %1805 = vst [vmem:[%s422 + $0x5c] sm:$0xf] %v1381
        %1806 = vst [vmem:[%s422 + $0x60] sm:$0xf] %v1383
        %1807 = vst [vmem:[%s422 + $0x64] sm:$0xf] %v1385
        %1808 = vst [vmem:[%s422 + $0x68] sm:$0xf] %v1387
        %1809 = vst [vmem:[%s422 + $0x6c] sm:$0xf] %v1389
        %1810 = vst [vmem:[%s422 + $0x70] sm:$0xf] %v1391
        %1811 = vst [vmem:[%s422 + $0x74] sm:$0xf] %v1393
        %1812 = vst [vmem:[%s422 + $0x78] sm:$0xf] %v1395
        %1813 = vst [vmem:[%s422 + $0x7c] sm:$0xf] %v1397
        %1814 = vst [vmem:[%s422 + $0x80] sm:$0xf] %v1399
        %1815 = vst [vmem:[%s422 + $0x84] sm:$0xf] %v1401
        %1816 = vst [vmem:[%s422 + $0x88] sm:$0xf] %v1403
        %1817 = vst [vmem:[%s422 + $0x8c] sm:$0xf] %v1405
        %1818 = vst [vmem:[%s422 + $0x90] sm:$0xf] %v1407
        %1819 = vst [vmem:[%s422 + $0x94] sm:$0xf] %v1409
        %1820 = vst [vmem:[%s422 + $0x98] sm:$0xf] %v1411
        %1821 = vst [vmem:[%s422 + $0x9c] sm:$0xf] %v1413
        %1822 = vst [vmem:[%s422 + $0xa0] sm:$0xf] %v1415
        %1823 = vst [vmem:[%s422 + $0xa4] sm:$0xf] %v1417
        %1824 = vst [vmem:[%s422 + $0xa8] sm:$0xf] %v1419
        %1825 = vst [vmem:[%s422 + $0xac] sm:$0xf] %v1421
        %1826 = vst [vmem:[%s422 + $0xb0] sm:$0xf] %v1423
        %1827 = vst [vmem:[%s422 + $0xb4] sm:$0xf] %v1425
        %1828 = vst [vmem:[%s422 + $0xb8] sm:$0xf] %v1427
        %1829 = vst [vmem:[%s422 + $0xbc] sm:$0xf] %v1429
        %1830 = vst [vmem:[%s422 + $0xc0] sm:$0xf] %v1431
        %1831 = vst [vmem:[%s422 + $0xc4] sm:$0xf] %v1433
        %1832 = vst [vmem:[%s422 + $0xc8] sm:$0xf] %v1435
        %1833 = vst [vmem:[%s422 + $0xcc] sm:$0xf] %v1437
        %1834 = vst [vmem:[%s422 + $0xd0] sm:$0xf] %v1439
        %1835 = vst [vmem:[%s422 + $0xd4] sm:$0xf] %v1441
        %1836 = vst [vmem:[%s422 + $0xd8] sm:$0xf] %v1443
        %1837 = vst [vmem:[%s422 + $0xdc] sm:$0xf] %v1445
        %1838 = vst [vmem:[%s422 + $0xe0] sm:$0xf] %v1447
        %1839 = vst [vmem:[%s422 + $0xe4] sm:$0xf] %v1449
        %1840 = vst [vmem:[%s422 + $0xe8] sm:$0xf] %v1451
        %1841 = vst [vmem:[%s422 + $0xec] sm:$0xf] %v1453
        %1842 = vst [vmem:[%s422 + $0xf0] sm:$0xf] %v1455
        %1843 = vst [vmem:[%s422 + $0xf4] sm:$0xf] %v1457
        %1844 = vst [vmem:[%s422 + $0xf8] sm:$0xf] %v1459
        %1845 = vst [vmem:[%s422 + $0xfc] sm:$0xf] %v1461
        %s1846 = sand.u32 %s176, 1
        %s1847 = scalar_lea.sflag [#allocation4], %s1846
        %s1848 = sand.u32 %s176, 1
        %s1849 = smul.addr %s1848, 256
        %s1850 = scalar_lea.vmem [#allocation10], %s1849
        %s1851 = sand.u32 %s32, 1
        %s1852 = scalar_lea.sflag [#allocation12], %s1851
        %s1853 = sand.u32 %s204, 1
        %s1854 = smul.addr %s1853, 256
        %s1855 = scalar_lea.vmem [#allocation11], %s1854
        %s1856 = sand.u32 %s32, 1
        %s1857 = scalar_lea.sflag [#allocation12], %s1856
        %s1858 = sand.u32 %s232, 1
        %s1859 = smul.addr %s1858, 256
        %s1860 = scalar_lea.vmem [#allocation13], %s1859
        // Predicated region
        $region57: #{tpu_custom_call.1} parent=39 // pred_check
          %p1861 = pneg %p186
        $region58: #{tpu_custom_call.1} parent=39 // pred_check_branch
          %1863 = sbr.rel (%p1861) target = $region60
        $region59: #{tpu_custom_call.1} parent=39 // pred_region
          %s1864 = smul.u32 64, %s37
          %1866 = vsyncadd %s1847, 0
          %s1867 = smul.addr %s36, 128
          %s1868 = sadd.s32 %s1864, %s1867
          %s1869 = smul.addr %s1868, 4
          %s1870 = scalar_lea.hbm %s5, %s1869
          %s1871 = sshll.u32 %s1850, 4
          %s1872 = int_to_ptr.vmem [resolvable:$true] %s1871
          %s1873 = sshll.u32 %s1870, 4
          %s1874 = int_to_ptr.hbm [resolvable:$true] %s1873
          %1879 = dma.vmem_to_hbm [thread:$0]  %s1872, 4096, %s1874, %s1847, 64, 64, 4
        $region60: #{tpu_custom_call.1} parent=39 // pred_fallthru
          _
        // Predicated region
        $region61: #{tpu_custom_call.1} parent=39 // pred_check
          %p1880 = pneg %p214
        $region62: #{tpu_custom_call.1} parent=39 // pred_check_branch
          %1882 = sbr.rel (%p1880) target = $region64
        $region63: #{tpu_custom_call.1} parent=39 // pred_region
          %s1883 = smul.u32 64, %s37
          %1885 = vsyncadd %s1852, 0
          %s1886 = smul.addr %s36, 128
          %s1887 = sadd.s32 %s1883, %s1886
          %s1888 = smul.addr %s1887, 4
          %s1889 = scalar_lea.hbm %s6, %s1888
          %s1890 = sshll.u32 %s1855, 4
          %s1891 = int_to_ptr.vmem [resolvable:$true] %s1890
          %s1892 = sshll.u32 %s1889, 4
          %s1893 = int_to_ptr.hbm [resolvable:$true] %s1892
          %1898 = dma.vmem_to_hbm [thread:$0]  %s1891, 4096, %s1893, %s1852, 64, 64, 4
        $region64: #{tpu_custom_call.1} parent=39 // pred_fallthru
          _
        // Predicated region
        $region65: #{tpu_custom_call.1} parent=39 // pred_check
          %p1899 = pneg %p242
        $region66: #{tpu_custom_call.1} parent=39 // pred_check_branch
          %1901 = sbr.rel (%p1899) target = $region68
        $region67: #{tpu_custom_call.1} parent=39 // pred_region
          %s1902 = smul.u32 64, %s37
          %1904 = vsyncadd %s1857, 0
          %s1905 = smul.addr %s36, 128
          %s1906 = sadd.s32 %s1902, %s1905
          %s1907 = smul.addr %s1906, 4
          %s1908 = scalar_lea.hbm %s7, %s1907
          %s1909 = sshll.u32 %s1860, 4
          %s1910 = int_to_ptr.vmem [resolvable:$true] %s1909
          %s1911 = sshll.u32 %s1908, 4
          %s1912 = int_to_ptr.hbm [resolvable:$true] %s1911
          %1917 = dma.vmem_to_hbm [thread:$0]  %s1910, 4096, %s1912, %s1857, 64, 64, 4
        $region68: #{tpu_custom_call.1} parent=39 // pred_fallthru
          _
      $region40: #{tpu_custom_call.1} parent=5 // pred_fallthru
        _
      %p1918 = scmp.le.s32.totalorder 2, %s27
      // Predicated region
      $region69: #{tpu_custom_call.1} parent=5 // pred_check
        %p1919 = pneg %p1918
      $region70: #{tpu_custom_call.1} parent=5 // pred_check_branch
        %1921 = sbr.rel (%p1919) target = $region72
      $region71: #{tpu_custom_call.1} parent=5 // pred_region
        %s1922 = ssub.s32 %s27, 2
        // Predicated region
        $region73: #{tpu_custom_call.1} parent=71 // pred_check
          %p1923 = pneg %p192
        $region74: #{tpu_custom_call.1} parent=71 // pred_check_branch
          %1925 = sbr.rel (%p1923) target = $region76
        $region75: #{tpu_custom_call.1} parent=71 // pred_region
          %s1926 = sand.u32 %s177, 1
          %s1927 = scalar_lea.sflag [#allocation4], %s1926
          %s1928 = sand.u32 %s177, 1
          %s1929 = smul.addr %s1928, 256
          %s1930 = scalar_lea.vmem [#allocation10], %s1929
          %1932 = dma.done %s1927, 4096
        $region76: #{tpu_custom_call.1} parent=71 // pred_fallthru
          _
        // Predicated region
        $region77: #{tpu_custom_call.1} parent=71 // pred_check
          %p1933 = pneg %p220
        $region78: #{tpu_custom_call.1} parent=71 // pred_check_branch
          %1935 = sbr.rel (%p1933) target = $region80
        $region79: #{tpu_custom_call.1} parent=71 // pred_region
          %s1936 = sand.u32 %s33, 1
          %s1937 = scalar_lea.sflag [#allocation12], %s1936
          %s1938 = sand.u32 %s205, 1
          %s1939 = smul.addr %s1938, 256
          %s1940 = scalar_lea.vmem [#allocation11], %s1939
          %1942 = dma.done %s1937, 4096
        $region80: #{tpu_custom_call.1} parent=71 // pred_fallthru
          _
        // Predicated region
        $region81: #{tpu_custom_call.1} parent=71 // pred_check
          %p1943 = pneg %p248
        $region82: #{tpu_custom_call.1} parent=71 // pred_check_branch
          %1945 = sbr.rel (%p1943) target = $region84
        $region83: #{tpu_custom_call.1} parent=71 // pred_region
          %s1946 = sand.u32 %s33, 1
          %s1947 = scalar_lea.sflag [#allocation12], %s1946
          %s1948 = sand.u32 %s233, 1
          %s1949 = smul.addr %s1948, 256
          %s1950 = scalar_lea.vmem [#allocation13], %s1949
          %1952 = dma.done %s1947, 4096
        $region84: #{tpu_custom_call.1} parent=71 // pred_fallthru
          _
      $region72: #{tpu_custom_call.1} parent=5 // pred_fallthru
        _
    $region6: #{tpu_custom_call.1} parent=1 // loop_footer
      %s31 = sadd.s32 1, %s27
    $region7: #{tpu_custom_call.1} parent=1 // loop_footer_branch
      %26 = sbr.rel target = $region3
    $region8: #{tpu_custom_call.1} parent=1 // loop_exit
      _
    %1953 = vsyncpa [#allocation3], 1
    %s1954 = scalar_lea.sflag [#allocation3], 1
    %1955 = vsyncpa %s1954, 1
    %1956 = vsyncpa [#allocation6], 1
    %s1957 = scalar_lea.sflag [#allocation6], 1
    %1958 = vsyncpa %s1957, 1
    %1959 = vsyncpa [#allocation9], 1
    %1960 = vsyncpa [#allocation4], 1
    %s1961 = scalar_lea.sflag [#allocation4], 1
    %1962 = vsyncpa %s1961, 1
    %1963 = vsyncpa [#allocation12], 1
    %s1964 = scalar_lea.sflag [#allocation12], 1
    %1965 = vsyncpa %s1964, 1

</llo_original>
